<compile_context>
chip_gen: v7x
topology: tpu7x:2x2x1
jax: 0.10.0
libtpu: 0.0.40
codegen_flags: <defaults>
</compile_context>

<pallas_src>
import functools

import jax
import jax.numpy as jnp
from jax.experimental import pallas as pl
from jax.experimental.pallas import tpu as pltpu

FILTERS = 64
K_NEIGHBORS = 6  # "KNN6" dataset: every node has exactly 6 incoming edges


# ---------------------------------------------------------------------------
# Fused kernel: 3x PointNetLayer + global_mean_pool + both regressors
# ---------------------------------------------------------------------------
def _fused_pointnet_kernel(pos_ref, gat_ref, rel_ref, mean_ref,
                           w1a1_ref, w1r1_ref, b11_ref, w21_ref, b21_ref,
                           w1h2_ref, w1p2_ref, b12_ref, w22_ref, b22_ref,
                           wr_ref, br_ref, out_ref):
    npad = pos_ref.shape[0]            # padded node count (multiple of 8)
    k = rel_ref.shape[0] // npad       # K incoming edges per node

    gat = gat_ref[...]                 # [K*Npad, Npad] bf16 one-hot gather
    rel = rel_ref[...]                 # [K*Npad, 3]    bf16 (pos_j - pos_i)

    def mlp_max_relu(hidden, w2_ref, b2_ref):
        # message = ReLU(hidden) @ W2 + b2 ; aggr='max' over the K row-blocks
        # (unrolled, stays in registers) fused with the outer .relu().
        hidden = jnp.maximum(hidden, 0.0)
        msg = (jnp.dot(hidden.astype(jnp.bfloat16), w2_ref[...],
                       preferred_element_type=jnp.float32)
               + b2_ref[...])                                    # [K*Npad, F]
        agg = msg[0:npad, :]
        for kk in range(1, k):
            agg = jnp.maximum(agg, msg[kk * npad:(kk + 1) * npad, :])
        return jnp.maximum(agg, 0.0)

    # --- conv1: h == pos, so  h_j@W1h + rel@W1p == pos_i@W1h + rel@(W1h+W1p)
    #     -> no neighbor-gather matmul at all for the first layer.
    pos_proj = jnp.dot(pos_ref[...].astype(jnp.bfloat16), w1a1_ref[...],
                       preferred_element_type=jnp.float32)       # [Npad, F]
    hidden = (jnp.concatenate([pos_proj] * k, axis=0)            # tile over K
              + jnp.dot(rel, w1r1_ref[...], preferred_element_type=jnp.float32)
              + b11_ref[...])
    h = mlp_max_relu(hidden, w21_ref, b21_ref)

    # --- conv2 (applied twice in the reference forward; conv3 is unused) ---
    def conv2_layer(h):
        # project first ([Npad,C]@[C,F]) then one-hot gather: K x fewer proj flops.
        proj = jnp.dot(h.astype(jnp.bfloat16), w1h2_ref[...],
                       preferred_element_type=jnp.float32)       # [Npad, F]
        hj = jnp.dot(gat, proj.astype(jnp.bfloat16),
                     preferred_element_type=jnp.float32)         # [K*Npad, F]
        hidden = (hj
                  + jnp.dot(rel, w1p2_ref[...], preferred_element_type=jnp.float32)
                  + b12_ref[...])
        return mlp_max_relu(hidden, w22_ref, b22_ref)

    h = conv2_layer(h)
    h = conv2_layer(h)

    # global_mean_pool as a [G, Npad] matmul + fused [F, 2] regressor matmul.
    pooled = jnp.dot(mean_ref[...], h.astype(jnp.bfloat16),
                     preferred_element_type=jnp.float32)         # [G, F]
    out_ref[...] = (jnp.dot(pooled.astype(jnp.bfloat16), wr_ref[...],
                            preferred_element_type=jnp.float32)
                    + br_ref[...])                               # [G, 2]


def _round_up(x, m):
    return (x + m - 1) // m * m


def pointnet_forward(pos, edge_index, batch, params, num_graphs):
    """pos: [N, 3] f32, edge_index: [2, N*K] i32 (source, target), batch: [N] i32."""
    N = pos.shape[0]
    K = K_NEIGHBORS
    # TODO(synk): remove_isolated_nodes is a no-op for a KNN graph covering all
    # nodes (every node is a target of exactly K edges); ragged / non-uniform
    # in-degree (general segment-max) is not handled here.
    src, dst = edge_index[0], edge_index[1]
    order = jnp.argsort(dst)                          # group edges by target
    src_by_k = src[order].reshape(N, K).T             # [K, N]

    npad = max(8, _round_up(N, 8))
    pad = npad - N

    # One-hot gather matrix [K*Npad, Npad]; padded edge rows are all-zero.
    src_pad = jnp.pad(src_by_k, ((0, 0), (0, pad)), constant_values=-1)
    gat = (src_pad.reshape(-1)[:, None] == jnp.arange(npad)[None, :]
           ).astype(jnp.bfloat16)

    # rel = pos_j - pos_i is layer-invariant: build once, flat [K*Npad, 3].
    rel = pos[src_by_k] - pos[None, :, :]             # [K, N, 3]
    rel = jnp.pad(rel, ((0, 0), (0, pad), (0, 0)))
    rel = rel.reshape(K * npad, 3).astype(jnp.bfloat16)

    pos_pad = jnp.pad(pos, ((0, pad), (0, 0)))

    # global_mean_pool as a [G, Npad] matmul (zero weight on padded nodes).
    onehot = (batch[None, :] == jnp.arange(num_graphs)[:, None]).astype(jnp.float32)
    counts = jnp.maximum(onehot.sum(axis=1, keepdims=True), 1.0)
    mean_mat = jnp.pad(onehot / counts, ((0, 0), (0, pad))).astype(jnp.bfloat16)

    vmem = pl.BlockSpec(memory_space=pltpu.MemorySpace.VMEM)
    out = pl.pallas_call(
        _fused_pointnet_kernel,
        out_shape=jax.ShapeDtypeStruct((num_graphs, 2), jnp.float32),
        in_specs=[vmem] * 16,
        out_specs=vmem,
    )(pos_pad, gat, rel, mean_mat,
      *params["conv1"], *params["conv2"],
      params["reg_w"], params["reg_b"])
    return [out[:, 0:1], out[:, 1:2]]


# ---------------------------------------------------------------------------
# Deterministic parameter init (shapes follow torch Linear; stored as (in, out))
# ---------------------------------------------------------------------------
def _linear_params(key, fan_in, fan_out):
    kw, kb = jax.random.split(key)
    bound = 1.0 / jnp.sqrt(float(fan_in))
    w = jax.random.uniform(kw, (fan_in, fan_out), jnp.float32, -bound, bound)
    b = jax.random.uniform(kb, (1, fan_out), jnp.float32, -bound, bound)
    return w, b


def init_params():
    key = jax.random.PRNGKey(12345)
    keys = jax.random.split(key, 8)
    c1w1, c1b1 = _linear_params(keys[0], 3 + 3, FILTERS)
    c1w2, c1b2 = _linear_params(keys[1], FILTERS, FILTERS)
    c2w1, c2b1 = _linear_params(keys[2], FILTERS + 3, FILTERS)
    c2w2, c2b2 = _linear_params(keys[3], FILTERS, FILTERS)
    _ = _linear_params(keys[4], FILTERS + 3, FILTERS)   # conv3: unused in fwd
    r1w, r1b = _linear_params(keys[5], FILTERS, 1)
    r2w, r2b = _linear_params(keys[6], FILTERS, 1)

    # conv1: fold W1 so that hidden = pos_i @ W1[:3] + rel @ (W1[:3] + W1[3:]) + b1
    conv1 = (c1w1[:3].astype(jnp.bfloat16),                    # applied to pos_i
             (c1w1[:3] + c1w1[3:]).astype(jnp.bfloat16),       # applied to rel
             c1b1, c1w2.astype(jnp.bfloat16), c1b2)
    # conv2: split W1 into h_j part (first F rows) and rel part (last 3 rows).
    conv2 = (c2w1[:FILTERS].astype(jnp.bfloat16),
             c2w1[FILTERS:].astype(jnp.bfloat16),
             c2b1, c2w2.astype(jnp.bfloat16), c2b2)

    return {
        "conv1": conv1,
        "conv2": conv2,
        "reg_w": jnp.concatenate([r1w, r2w], axis=1).astype(jnp.bfloat16),
        "reg_b": jnp.concatenate([r1b, r2b], axis=1),
    }


# ---------------------------------------------------------------------------
# Pure-JAX reference with identical bf16 matmul semantics (correctness check)
# ---------------------------------------------------------------------------
def ref_forward(pos, edge_index, batch, params, num_graphs):
    N = pos.shape[0]
    K = K_NEIGHBORS
    src, dst = edge_index[0], edge_index[1]
    src_by_k = src[jnp.argsort(dst)].reshape(N, K).T
    src_flat = src_by_k.reshape(-1)
    rel = (pos[src_by_k] - pos[None, :, :]).reshape(-1, 3).astype(jnp.bfloat16)

    def mlp_max_relu(hidden, w2, b2):
        hidden = jnp.maximum(hidden, 0.0)
        msg = jnp.dot(hidden.astype(jnp.bfloat16), w2,
                      preferred_element_type=jnp.float32) + b2
        agg = jnp.max(msg.reshape(K, N, -1), axis=0)
        return jnp.maximum(agg, 0.0)

    w1a1, w1r1, b11, w21, b21 = params["conv1"]
    pos_proj = jnp.dot(pos.astype(jnp.bfloat16), w1a1,
                       preferred_element_type=jnp.float32)
    hidden = (jnp.tile(pos_proj, (K, 1))
              + jnp.dot(rel, w1r1, preferred_element_type=jnp.float32) + b11)
    h = mlp_max_relu(hidden, w21, b21)

    w1h2, w1p2, b12, w22, b22 = params["conv2"]

    def conv2_layer(h):
        proj = jnp.dot(h.astype(jnp.bfloat16), w1h2,
                       preferred_element_type=jnp.float32)
        hj = proj.astype(jnp.bfloat16).astype(jnp.float32)[src_flat]
        hidden = hj + jnp.dot(rel, w1p2, preferred_element_type=jnp.float32) + b12
        return mlp_max_relu(hidden, w22, b22)

    h = conv2_layer(h)
    h = conv2_layer(h)

    onehot = (batch[None, :] == jnp.arange(num_graphs)[:, None]).astype(jnp.float32)
    mean_mat = (onehot / jnp.maximum(onehot.sum(axis=1, keepdims=True), 1.0)
                ).astype(jnp.bfloat16)
    pooled = jnp.dot(mean_mat, h.astype(jnp.bfloat16),
                     preferred_element_type=jnp.float32)
    out = jnp.dot(pooled.astype(jnp.bfloat16), params["reg_w"],
                  preferred_element_type=jnp.float32) + params["reg_b"]
    return [out[:, 0:1], out[:, 1:2]]


# ---------------------------------------------------------------------------
if __name__ == "__main__":
    G = 2                 # graphs in the batch
    NODES_PER_GRAPH = 16
    N = G * NODES_PER_GRAPH

    key = jax.random.PRNGKey(0)
    pos = jax.random.normal(key, (N, 3), jnp.float32)
    batch = jnp.repeat(jnp.arange(G, dtype=jnp.int32), NODES_PER_GRAPH)

    # Deterministic KNN-6 edge_index (source -> target), graph-local.
    d2 = jnp.sum((pos[:, None, :] - pos[None, :, :]) ** 2, axis=-1)
    same_graph = batch[:, None] == batch[None, :]
    d2 = jnp.where(same_graph, d2, jnp.inf)
    d2 = jnp.where(jnp.eye(N, dtype=bool), jnp.inf, d2)       # exclude self
    nbr = jnp.argsort(d2, axis=1)[:, :K_NEIGHBORS]            # [N, K] sources
    dst = jnp.repeat(jnp.arange(N, dtype=jnp.int32), K_NEIGHBORS)
    src = nbr.reshape(-1).astype(jnp.int32)
    edge_index = jnp.stack([src, dst])                        # [2, N*K]

    params = init_params()

    fwd = jax.jit(functools.partial(pointnet_forward, num_graphs=G))
    out1, out2 = fwd(pos, edge_index, batch, params)
    jax.block_until_ready((out1, out2))

    ref1, ref2 = ref_forward(pos, edge_index, batch, params, G)
    assert out1.shape == (G, 1) and out2.shape == (G, 1)
    assert jnp.allclose(out1, ref1, atol=2e-3, rtol=2e-3)
    assert jnp.allclose(out2, ref2, atol=2e-3, rtol=2e-3)

    print("KERNEL_OK")
</pallas_src>

<mosaic_0001>
module attributes {stable_mosaic.version = 11 : i64} {
  func.func @_fused_pointnet_kernel(%arg0: memref<32x3xf32, #tpu.memory_space<vmem>>, %arg1: memref<192x32xbf16, #tpu.memory_space<vmem>>, %arg2: memref<192x3xbf16, #tpu.memory_space<vmem>>, %arg3: memref<2x32xbf16, #tpu.memory_space<vmem>>, %arg4: memref<3x64xbf16, #tpu.memory_space<vmem>>, %arg5: memref<3x64xbf16, #tpu.memory_space<vmem>>, %arg6: memref<1x64xf32, #tpu.memory_space<vmem>>, %arg7: memref<64x64xbf16, #tpu.memory_space<vmem>>, %arg8: memref<1x64xf32, #tpu.memory_space<vmem>>, %arg9: memref<64x64xbf16, #tpu.memory_space<vmem>>, %arg10: memref<3x64xbf16, #tpu.memory_space<vmem>>, %arg11: memref<1x64xf32, #tpu.memory_space<vmem>>, %arg12: memref<64x64xbf16, #tpu.memory_space<vmem>>, %arg13: memref<1x64xf32, #tpu.memory_space<vmem>>, %arg14: memref<64x2xbf16, #tpu.memory_space<vmem>>, %arg15: memref<1x2xf32, #tpu.memory_space<vmem>>, %arg16: memref<2x2xf32, #tpu.memory_space<vmem>>) attributes {dimension_semantics = [], scalar_prefetch = 0 : i64, scratch_operands = 0 : i64, tpu.core_type = #tpu.core_type<tc>} {
    %c0 = arith.constant 0 : index
    %c0_0 = arith.constant 0 : index
    %0 = vector.load %arg1[%c0, %c0_0] : memref<192x32xbf16, #tpu.memory_space<vmem>>, vector<192x32xbf16>
    %c0_1 = arith.constant 0 : index
    %c0_2 = arith.constant 0 : index
    %1 = vector.load %arg2[%c0_1, %c0_2] : memref<192x3xbf16, #tpu.memory_space<vmem>>, vector<192x3xbf16>
    %c0_3 = arith.constant 0 : index
    %c0_4 = arith.constant 0 : index
    %2 = vector.load %arg0[%c0_3, %c0_4] : memref<32x3xf32, #tpu.memory_space<vmem>>, vector<32x3xf32>
    %3 = arith.truncf %2 : vector<32x3xf32> to vector<32x3xbf16>
    %c0_5 = arith.constant 0 : index
    %c0_6 = arith.constant 0 : index
    %4 = vector.load %arg4[%c0_5, %c0_6] : memref<3x64xbf16, #tpu.memory_space<vmem>>, vector<3x64xbf16>
    %cst = arith.constant dense<0.000000e+00> : vector<32x64xf32>
    %5 = tpu.matmul %3, %4, %cst {dimension_numbers = #tpu.dot_dimension_numbers<[1], [0], [0], [1], [0, 0, 1, 1], [], []>} : vector<32x3xbf16>, vector<3x64xbf16>, vector<32x64xf32> -> vector<32x64xf32>
    %6 = tpu.concatenate %5, %5, %5, %5, %5, %5 in 0 : vector<32x64xf32>, vector<32x64xf32>, vector<32x64xf32>, vector<32x64xf32>, vector<32x64xf32>, vector<32x64xf32> -> vector<192x64xf32>
    %c0_7 = arith.constant 0 : index
    %c0_8 = arith.constant 0 : index
    %7 = vector.load %arg5[%c0_7, %c0_8] : memref<3x64xbf16, #tpu.memory_space<vmem>>, vector<3x64xbf16>
    %cst_9 = arith.constant dense<0.000000e+00> : vector<192x64xf32>
    %8 = tpu.matmul %1, %7, %cst_9 {dimension_numbers = #tpu.dot_dimension_numbers<[1], [0], [0], [1], [0, 0, 1, 1], [], []>} : vector<192x3xbf16>, vector<3x64xbf16>, vector<192x64xf32> -> vector<192x64xf32>
    %9 = arith.addf %6, %8 : vector<192x64xf32>
    %c0_10 = arith.constant 0 : index
    %c0_11 = arith.constant 0 : index
    %10 = vector.load %arg6[%c0_10, %c0_11] : memref<1x64xf32, #tpu.memory_space<vmem>>, vector<1x64xf32>
    %11 = vector.broadcast %10 : vector<1x64xf32> to vector<192x64xf32>
    %12 = arith.addf %9, %11 : vector<192x64xf32>
    %cst_12 = arith.constant 0.000000e+00 : f32
    %13 = vector.broadcast %cst_12 : f32 to vector<192x64xf32>
    %14 = arith.maximumf %12, %13 : vector<192x64xf32>
    %15 = arith.truncf %14 : vector<192x64xf32> to vector<192x64xbf16>
    %c0_13 = arith.constant 0 : index
    %c0_14 = arith.constant 0 : index
    %16 = vector.load %arg7[%c0_13, %c0_14] : memref<64x64xbf16, #tpu.memory_space<vmem>>, vector<64x64xbf16>
    %cst_15 = arith.constant dense<0.000000e+00> : vector<192x64xf32>
    %17 = tpu.matmul %15, %16, %cst_15 {dimension_numbers = #tpu.dot_dimension_numbers<[1], [0], [0], [1], [0, 0, 1, 1], [], []>} : vector<192x64xbf16>, vector<64x64xbf16>, vector<192x64xf32> -> vector<192x64xf32>
    %c0_16 = arith.constant 0 : index
    %c0_17 = arith.constant 0 : index
    %18 = vector.load %arg8[%c0_16, %c0_17] : memref<1x64xf32, #tpu.memory_space<vmem>>, vector<1x64xf32>
    %19 = vector.broadcast %18 : vector<1x64xf32> to vector<192x64xf32>
    %20 = arith.addf %17, %19 : vector<192x64xf32>
    %21 = vector.extract_strided_slice %20 {offsets = [0, 0], sizes = [32, 64], strides = [1, 1]} : vector<192x64xf32> to vector<32x64xf32>
    %22 = vector.extract_strided_slice %20 {offsets = [32, 0], sizes = [32, 64], strides = [1, 1]} : vector<192x64xf32> to vector<32x64xf32>
    %23 = arith.maximumf %21, %22 : vector<32x64xf32>
    %24 = vector.extract_strided_slice %20 {offsets = [64, 0], sizes = [32, 64], strides = [1, 1]} : vector<192x64xf32> to vector<32x64xf32>
    %25 = arith.maximumf %23, %24 : vector<32x64xf32>
    %26 = vector.extract_strided_slice %20 {offsets = [96, 0], sizes = [32, 64], strides = [1, 1]} : vector<192x64xf32> to vector<32x64xf32>
    %27 = arith.maximumf %25, %26 : vector<32x64xf32>
    %28 = vector.extract_strided_slice %20 {offsets = [128, 0], sizes = [32, 64], strides = [1, 1]} : vector<192x64xf32> to vector<32x64xf32>
    %29 = arith.maximumf %27, %28 : vector<32x64xf32>
    %30 = vector.extract_strided_slice %20 {offsets = [160, 0], sizes = [32, 64], strides = [1, 1]} : vector<192x64xf32> to vector<32x64xf32>
    %31 = arith.maximumf %29, %30 : vector<32x64xf32>
    %cst_18 = arith.constant 0.000000e+00 : f32
    %32 = vector.broadcast %cst_18 : f32 to vector<32x64xf32>
    %33 = arith.maximumf %31, %32 : vector<32x64xf32>
    %34 = arith.truncf %33 : vector<32x64xf32> to vector<32x64xbf16>
    %c0_19 = arith.constant 0 : index
    %c0_20 = arith.constant 0 : index
    %35 = vector.load %arg9[%c0_19, %c0_20] : memref<64x64xbf16, #tpu.memory_space<vmem>>, vector<64x64xbf16>
    %cst_21 = arith.constant dense<0.000000e+00> : vector<32x64xf32>
    %36 = tpu.matmul %34, %35, %cst_21 {dimension_numbers = #tpu.dot_dimension_numbers<[1], [0], [0], [1], [0, 0, 1, 1], [], []>} : vector<32x64xbf16>, vector<64x64xbf16>, vector<32x64xf32> -> vector<32x64xf32>
    %37 = arith.truncf %36 : vector<32x64xf32> to vector<32x64xbf16>
    %cst_22 = arith.constant dense<0.000000e+00> : vector<192x64xf32>
    %38 = tpu.matmul %0, %37, %cst_22 {dimension_numbers = #tpu.dot_dimension_numbers<[1], [0], [0], [1], [0, 0, 1, 1], [], []>} : vector<192x32xbf16>, vector<32x64xbf16>, vector<192x64xf32> -> vector<192x64xf32>
    %c0_23 = arith.constant 0 : index
    %c0_24 = arith.constant 0 : index
    %39 = vector.load %arg10[%c0_23, %c0_24] : memref<3x64xbf16, #tpu.memory_space<vmem>>, vector<3x64xbf16>
    %cst_25 = arith.constant dense<0.000000e+00> : vector<192x64xf32>
    %40 = tpu.matmul %1, %39, %cst_25 {dimension_numbers = #tpu.dot_dimension_numbers<[1], [0], [0], [1], [0, 0, 1, 1], [], []>} : vector<192x3xbf16>, vector<3x64xbf16>, vector<192x64xf32> -> vector<192x64xf32>
    %41 = arith.addf %38, %40 : vector<192x64xf32>
    %c0_26 = arith.constant 0 : index
    %c0_27 = arith.constant 0 : index
    %42 = vector.load %arg11[%c0_26, %c0_27] : memref<1x64xf32, #tpu.memory_space<vmem>>, vector<1x64xf32>
    %43 = vector.broadcast %42 : vector<1x64xf32> to vector<192x64xf32>
    %44 = arith.addf %41, %43 : vector<192x64xf32>
    %cst_28 = arith.constant 0.000000e+00 : f32
    %45 = vector.broadcast %cst_28 : f32 to vector<192x64xf32>
    %46 = arith.maximumf %44, %45 : vector<192x64xf32>
    %47 = arith.truncf %46 : vector<192x64xf32> to vector<192x64xbf16>
    %c0_29 = arith.constant 0 : index
    %c0_30 = arith.constant 0 : index
    %48 = vector.load %arg12[%c0_29, %c0_30] : memref<64x64xbf16, #tpu.memory_space<vmem>>, vector<64x64xbf16>
    %cst_31 = arith.constant dense<0.000000e+00> : vector<192x64xf32>
    %49 = tpu.matmul %47, %48, %cst_31 {dimension_numbers = #tpu.dot_dimension_numbers<[1], [0], [0], [1], [0, 0, 1, 1], [], []>} : vector<192x64xbf16>, vector<64x64xbf16>, vector<192x64xf32> -> vector<192x64xf32>
    %c0_32 = arith.constant 0 : index
    %c0_33 = arith.constant 0 : index
    %50 = vector.load %arg13[%c0_32, %c0_33] : memref<1x64xf32, #tpu.memory_space<vmem>>, vector<1x64xf32>
    %51 = vector.broadcast %50 : vector<1x64xf32> to vector<192x64xf32>
    %52 = arith.addf %49, %51 : vector<192x64xf32>
    %53 = vector.extract_strided_slice %52 {offsets = [0, 0], sizes = [32, 64], strides = [1, 1]} : vector<192x64xf32> to vector<32x64xf32>
    %54 = vector.extract_strided_slice %52 {offsets = [32, 0], sizes = [32, 64], strides = [1, 1]} : vector<192x64xf32> to vector<32x64xf32>
    %55 = arith.maximumf %53, %54 : vector<32x64xf32>
    %56 = vector.extract_strided_slice %52 {offsets = [64, 0], sizes = [32, 64], strides = [1, 1]} : vector<192x64xf32> to vector<32x64xf32>
    %57 = arith.maximumf %55, %56 : vector<32x64xf32>
    %58 = vector.extract_strided_slice %52 {offsets = [96, 0], sizes = [32, 64], strides = [1, 1]} : vector<192x64xf32> to vector<32x64xf32>
    %59 = arith.maximumf %57, %58 : vector<32x64xf32>
    %60 = vector.extract_strided_slice %52 {offsets = [128, 0], sizes = [32, 64], strides = [1, 1]} : vector<192x64xf32> to vector<32x64xf32>
    %61 = arith.maximumf %59, %60 : vector<32x64xf32>
    %62 = vector.extract_strided_slice %52 {offsets = [160, 0], sizes = [32, 64], strides = [1, 1]} : vector<192x64xf32> to vector<32x64xf32>
    %63 = arith.maximumf %61, %62 : vector<32x64xf32>
    %cst_34 = arith.constant 0.000000e+00 : f32
    %64 = vector.broadcast %cst_34 : f32 to vector<32x64xf32>
    %65 = arith.maximumf %63, %64 : vector<32x64xf32>
    %66 = arith.truncf %65 : vector<32x64xf32> to vector<32x64xbf16>
    %c0_35 = arith.constant 0 : index
    %c0_36 = arith.constant 0 : index
    %67 = vector.load %arg9[%c0_35, %c0_36] : memref<64x64xbf16, #tpu.memory_space<vmem>>, vector<64x64xbf16>
    %cst_37 = arith.constant dense<0.000000e+00> : vector<32x64xf32>
    %68 = tpu.matmul %66, %67, %cst_37 {dimension_numbers = #tpu.dot_dimension_numbers<[1], [0], [0], [1], [0, 0, 1, 1], [], []>} : vector<32x64xbf16>, vector<64x64xbf16>, vector<32x64xf32> -> vector<32x64xf32>
    %69 = arith.truncf %68 : vector<32x64xf32> to vector<32x64xbf16>
    %cst_38 = arith.constant dense<0.000000e+00> : vector<192x64xf32>
    %70 = tpu.matmul %0, %69, %cst_38 {dimension_numbers = #tpu.dot_dimension_numbers<[1], [0], [0], [1], [0, 0, 1, 1], [], []>} : vector<192x32xbf16>, vector<32x64xbf16>, vector<192x64xf32> -> vector<192x64xf32>
    %c0_39 = arith.constant 0 : index
    %c0_40 = arith.constant 0 : index
    %71 = vector.load %arg10[%c0_39, %c0_40] : memref<3x64xbf16, #tpu.memory_space<vmem>>, vector<3x64xbf16>
    %cst_41 = arith.constant dense<0.000000e+00> : vector<192x64xf32>
    %72 = tpu.matmul %1, %71, %cst_41 {dimension_numbers = #tpu.dot_dimension_numbers<[1], [0], [0], [1], [0, 0, 1, 1], [], []>} : vector<192x3xbf16>, vector<3x64xbf16>, vector<192x64xf32> -> vector<192x64xf32>
    %73 = arith.addf %70, %72 : vector<192x64xf32>
    %c0_42 = arith.constant 0 : index
    %c0_43 = arith.constant 0 : index
    %74 = vector.load %arg11[%c0_42, %c0_43] : memref<1x64xf32, #tpu.memory_space<vmem>>, vector<1x64xf32>
    %75 = vector.broadcast %74 : vector<1x64xf32> to vector<192x64xf32>
    %76 = arith.addf %73, %75 : vector<192x64xf32>
    %cst_44 = arith.constant 0.000000e+00 : f32
    %77 = vector.broadcast %cst_44 : f32 to vector<192x64xf32>
    %78 = arith.maximumf %76, %77 : vector<192x64xf32>
    %79 = arith.truncf %78 : vector<192x64xf32> to vector<192x64xbf16>
    %c0_45 = arith.constant 0 : index
    %c0_46 = arith.constant 0 : index
    %80 = vector.load %arg12[%c0_45, %c0_46] : memref<64x64xbf16, #tpu.memory_space<vmem>>, vector<64x64xbf16>
    %cst_47 = arith.constant dense<0.000000e+00> : vector<192x64xf32>
    %81 = tpu.matmul %79, %80, %cst_47 {dimension_numbers = #tpu.dot_dimension_numbers<[1], [0], [0], [1], [0, 0, 1, 1], [], []>} : vector<192x64xbf16>, vector<64x64xbf16>, vector<192x64xf32> -> vector<192x64xf32>
    %c0_48 = arith.constant 0 : index
    %c0_49 = arith.constant 0 : index
    %82 = vector.load %arg13[%c0_48, %c0_49] : memref<1x64xf32, #tpu.memory_space<vmem>>, vector<1x64xf32>
    %83 = vector.broadcast %82 : vector<1x64xf32> to vector<192x64xf32>
    %84 = arith.addf %81, %83 : vector<192x64xf32>
    %85 = vector.extract_strided_slice %84 {offsets = [0, 0], sizes = [32, 64], strides = [1, 1]} : vector<192x64xf32> to vector<32x64xf32>
    %86 = vector.extract_strided_slice %84 {offsets = [32, 0], sizes = [32, 64], strides = [1, 1]} : vector<192x64xf32> to vector<32x64xf32>
    %87 = arith.maximumf %85, %86 : vector<32x64xf32>
    %88 = vector.extract_strided_slice %84 {offsets = [64, 0], sizes = [32, 64], strides = [1, 1]} : vector<192x64xf32> to vector<32x64xf32>
    %89 = arith.maximumf %87, %88 : vector<32x64xf32>
    %90 = vector.extract_strided_slice %84 {offsets = [96, 0], sizes = [32, 64], strides = [1, 1]} : vector<192x64xf32> to vector<32x64xf32>
    %91 = arith.maximumf %89, %90 : vector<32x64xf32>
    %92 = vector.extract_strided_slice %84 {offsets = [128, 0], sizes = [32, 64], strides = [1, 1]} : vector<192x64xf32> to vector<32x64xf32>
    %93 = arith.maximumf %91, %92 : vector<32x64xf32>
    %94 = vector.extract_strided_slice %84 {offsets = [160, 0], sizes = [32, 64], strides = [1, 1]} : vector<192x64xf32> to vector<32x64xf32>
    %95 = arith.maximumf %93, %94 : vector<32x64xf32>
    %cst_50 = arith.constant 0.000000e+00 : f32
    %96 = vector.broadcast %cst_50 : f32 to vector<32x64xf32>
    %97 = arith.maximumf %95, %96 : vector<32x64xf32>
    %c0_51 = arith.constant 0 : index
    %c0_52 = arith.constant 0 : index
    %98 = vector.load %arg3[%c0_51, %c0_52] : memref<2x32xbf16, #tpu.memory_space<vmem>>, vector<2x32xbf16>
    %99 = arith.truncf %97 : vector<32x64xf32> to vector<32x64xbf16>
    %cst_53 = arith.constant dense<0.000000e+00> : vector<2x64xf32>
    %100 = tpu.matmul %98, %99, %cst_53 {dimension_numbers = #tpu.dot_dimension_numbers<[1], [0], [0], [1], [0, 0, 1, 1], [], []>} : vector<2x32xbf16>, vector<32x64xbf16>, vector<2x64xf32> -> vector<2x64xf32>
    %101 = arith.truncf %100 : vector<2x64xf32> to vector<2x64xbf16>
    %c0_54 = arith.constant 0 : index
    %c0_55 = arith.constant 0 : index
    %102 = vector.load %arg14[%c0_54, %c0_55] : memref<64x2xbf16, #tpu.memory_space<vmem>>, vector<64x2xbf16>
    %cst_56 = arith.constant dense<0.000000e+00> : vector<2x2xf32>
    %103 = tpu.matmul %101, %102, %cst_56 {dimension_numbers = #tpu.dot_dimension_numbers<[1], [0], [0], [1], [0, 0, 1, 1], [], []>} : vector<2x64xbf16>, vector<64x2xbf16>, vector<2x2xf32> -> vector<2x2xf32>
    %c0_57 = arith.constant 0 : index
    %c0_58 = arith.constant 0 : index
    %104 = vector.load %arg15[%c0_57, %c0_58] : memref<1x2xf32, #tpu.memory_space<vmem>>, vector<1x2xf32>
    %105 = vector.broadcast %104 : vector<1x2xf32> to vector<2x2xf32>
    %106 = arith.addf %103, %105 : vector<2x2xf32>
    %c0_59 = arith.constant 0 : index
    %c0_60 = arith.constant 0 : index
    %107 = vector.load %arg16[%c0_59, %c0_60] : memref<2x2xf32, #tpu.memory_space<vmem>>, vector<2x2xf32>
    tpu.vector_store %arg16[%c0_59, %c0_60], %106 {strides = array<i32>} : memref<2x2xf32, #tpu.memory_space<vmem>>, vector<2x2xf32>,
    return
  }
}

</mosaic_0001>

<llo_original>
// kernel: pointnet_forward.1
$region0: #{pointnet_forward.1}
  #allocation0 [shape = 'u32[]', space=smem, size = 0x4, offset = 0x4, fixed_abs, tag = 'smem constant byte address 0x4 - core index']
  #allocation1 [shape = 'u32[144,128]{1,0:T(1,128)}', space=vmem, size = 0x12000, scoped, tag = 'internal scratch']
  %s0 = inlined_call_operand.vmem [shape: f32[32,3], index: 0, kind: input, shape index: {}]
  %s1 = inlined_call_operand.vmem [shape: bf16[192,32], index: 1, kind: input, shape index: {}]
  %s2 = inlined_call_operand.vmem [shape: bf16[192,3], index: 2, kind: input, shape index: {}]
  %s3 = inlined_call_operand.vmem [shape: bf16[2,32], index: 3, kind: input, shape index: {}]
  %s4 = inlined_call_operand.vmem [shape: bf16[3,64], index: 4, kind: input, shape index: {}]
  %s5 = inlined_call_operand.vmem [shape: bf16[3,64], index: 5, kind: input, shape index: {}]
  %s6 = inlined_call_operand.vmem [shape: f32[1,64], index: 6, kind: input, shape index: {}]
  %s7 = inlined_call_operand.vmem [shape: bf16[64,64], index: 7, kind: input, shape index: {}]
  %s8 = inlined_call_operand.vmem [shape: f32[1,64], index: 8, kind: input, shape index: {}]
  %s9 = inlined_call_operand.vmem [shape: bf16[64,64], index: 9, kind: input, shape index: {}]
  %s10 = inlined_call_operand.vmem [shape: bf16[3,64], index: 10, kind: input, shape index: {}]
  %s11 = inlined_call_operand.vmem [shape: f32[1,64], index: 11, kind: input, shape index: {}]
  %s12 = inlined_call_operand.vmem [shape: bf16[64,64], index: 12, kind: input, shape index: {}]
  %s13 = inlined_call_operand.vmem [shape: f32[1,64], index: 13, kind: input, shape index: {}]
  %s14 = inlined_call_operand.vmem [shape: bf16[64,2], index: 14, kind: input, shape index: {}]
  %s15 = inlined_call_operand.vmem [shape: f32[1,2], index: 15, kind: input, shape index: {}]
  %s16 = inlined_call_operand.vmem [shape: f32[2,2], index: 16, kind: output, shape index: {}]
  %s17 = sld [smem:[#allocation0]]
  $region74: #{pointnet_forward.1} parent=0
    _
  %s19 = ssub.s32 1, %s17
  %s20 = scalar_select 0, %s19, %s17
  // Predicated region
  $region2: #{pointnet_forward.1} parent=0 // pred_check
    _
  $region3: #{pointnet_forward.1} parent=0 // pred_check_branch
    %22 = sbr.rel (0) target = $region5
  $region4: #{pointnet_forward.1} parent=0 // pred_region
    _
  $region5: #{pointnet_forward.1} parent=0 // pred_fallthru
    _
  // Predicated region
  $region6: #{pointnet_forward.1} parent=0 // pred_check
    _
  $region7: #{pointnet_forward.1} parent=0 // pred_check_branch
    %24 = sbr.rel (0) target = $region9
  $region8: #{pointnet_forward.1} parent=0 // pred_region
    _
  $region9: #{pointnet_forward.1} parent=0 // pred_fallthru
    _
  // Predicated region
  $region10: #{pointnet_forward.1} parent=0 // pred_check
    _
  $region11: #{pointnet_forward.1} parent=0 // pred_check_branch
    %26 = sbr.rel (0) target = $region13
  $region12: #{pointnet_forward.1} parent=0 // pred_region
    _
  $region13: #{pointnet_forward.1} parent=0 // pred_fallthru
    _
  // Predicated region
  $region14: #{pointnet_forward.1} parent=0 // pred_check
    _
  $region15: #{pointnet_forward.1} parent=0 // pred_check_branch
    %28 = sbr.rel (0) target = $region17
  $region16: #{pointnet_forward.1} parent=0 // pred_region
    _
  $region17: #{pointnet_forward.1} parent=0 // pred_fallthru
    _
  // Predicated region
  $region18: #{pointnet_forward.1} parent=0 // pred_check
    _
  $region19: #{pointnet_forward.1} parent=0 // pred_check_branch
    %30 = sbr.rel (0) target = $region21
  $region20: #{pointnet_forward.1} parent=0 // pred_region
    _
  $region21: #{pointnet_forward.1} parent=0 // pred_fallthru
    _
  // Predicated region
  $region22: #{pointnet_forward.1} parent=0 // pred_check
    _
  $region23: #{pointnet_forward.1} parent=0 // pred_check_branch
    %32 = sbr.rel (0) target = $region25
  $region24: #{pointnet_forward.1} parent=0 // pred_region
    _
  $region25: #{pointnet_forward.1} parent=0 // pred_fallthru
    _
  // Predicated region
  $region26: #{pointnet_forward.1} parent=0 // pred_check
    _
  $region27: #{pointnet_forward.1} parent=0 // pred_check_branch
    %34 = sbr.rel (0) target = $region29
  $region28: #{pointnet_forward.1} parent=0 // pred_region
    _
  $region29: #{pointnet_forward.1} parent=0 // pred_fallthru
    _
  // Predicated region
  $region30: #{pointnet_forward.1} parent=0 // pred_check
    _
  $region31: #{pointnet_forward.1} parent=0 // pred_check_branch
    %36 = sbr.rel (0) target = $region33
  $region32: #{pointnet_forward.1} parent=0 // pred_region
    _
  $region33: #{pointnet_forward.1} parent=0 // pred_fallthru
    _
  // Predicated region
  $region34: #{pointnet_forward.1} parent=0 // pred_check
    _
  $region35: #{pointnet_forward.1} parent=0 // pred_check_branch
    %38 = sbr.rel (0) target = $region37
  $region36: #{pointnet_forward.1} parent=0 // pred_region
    _
  $region37: #{pointnet_forward.1} parent=0 // pred_fallthru
    _
  // Predicated region
  $region38: #{pointnet_forward.1} parent=0 // pred_check
    _
  $region39: #{pointnet_forward.1} parent=0 // pred_check_branch
    %40 = sbr.rel (0) target = $region41
  $region40: #{pointnet_forward.1} parent=0 // pred_region
    _
  $region41: #{pointnet_forward.1} parent=0 // pred_fallthru
    _
  // Predicated region
  $region42: #{pointnet_forward.1} parent=0 // pred_check
    _
  $region43: #{pointnet_forward.1} parent=0 // pred_check_branch
    %42 = sbr.rel (0) target = $region45
  $region44: #{pointnet_forward.1} parent=0 // pred_region
    _
  $region45: #{pointnet_forward.1} parent=0 // pred_fallthru
    _
  // Predicated region
  $region46: #{pointnet_forward.1} parent=0 // pred_check
    _
  $region47: #{pointnet_forward.1} parent=0 // pred_check_branch
    %44 = sbr.rel (0) target = $region49
  $region48: #{pointnet_forward.1} parent=0 // pred_region
    _
  $region49: #{pointnet_forward.1} parent=0 // pred_fallthru
    _
  // Predicated region
  $region50: #{pointnet_forward.1} parent=0 // pred_check
    _
  $region51: #{pointnet_forward.1} parent=0 // pred_check_branch
    %46 = sbr.rel (0) target = $region53
  $region52: #{pointnet_forward.1} parent=0 // pred_region
    _
  $region53: #{pointnet_forward.1} parent=0 // pred_fallthru
    _
  // Predicated region
  $region54: #{pointnet_forward.1} parent=0 // pred_check
    _
  $region55: #{pointnet_forward.1} parent=0 // pred_check_branch
    %48 = sbr.rel (0) target = $region57
  $region56: #{pointnet_forward.1} parent=0 // pred_region
    _
  $region57: #{pointnet_forward.1} parent=0 // pred_fallthru
    _
  // Predicated region
  $region58: #{pointnet_forward.1} parent=0 // pred_check
    _
  $region59: #{pointnet_forward.1} parent=0 // pred_check_branch
    %50 = sbr.rel (0) target = $region61
  $region60: #{pointnet_forward.1} parent=0 // pred_region
    _
  $region61: #{pointnet_forward.1} parent=0 // pred_fallthru
    _
  // Predicated region
  $region62: #{pointnet_forward.1} parent=0 // pred_check
    _
  $region63: #{pointnet_forward.1} parent=0 // pred_check_branch
    %52 = sbr.rel (0) target = $region65
  $region64: #{pointnet_forward.1} parent=0 // pred_region
    _
  $region65: #{pointnet_forward.1} parent=0 // pred_fallthru
    _
  %v54 = vld [vmem:[%s1] sm:$0xf]
  %v55 = vld [vmem:[%s1 + $0x4] sm:$0xf]
  %v56 = vld [vmem:[%s1 + $0x8] sm:$0xf]
  %v57 = vld [vmem:[%s1 + $0xc] sm:$0xf]
  %v58 = vld [vmem:[%s1 + $0x10] sm:$0xf]
  %v59 = vld [vmem:[%s1 + $0x14] sm:$0xf]
  %v60 = vld [vmem:[%s1 + $0x18] sm:$0xf]
  %v61 = vld [vmem:[%s1 + $0x1c] sm:$0xf]
  %v62 = vld [vmem:[%s1 + $0x20] sm:$0xf]
  %v63 = vld [vmem:[%s1 + $0x24] sm:$0xf]
  %v64 = vld [vmem:[%s1 + $0x28] sm:$0xf]
  %v65 = vld [vmem:[%s1 + $0x2c] sm:$0xf]
  %v66 = vld [vmem:[%s1 + $0x30] sm:$0xf]
  %v67 = vld [vmem:[%s1 + $0x34] sm:$0xf]
  %v68 = vld [vmem:[%s1 + $0x38] sm:$0xf]
  %v69 = vld [vmem:[%s1 + $0x3c] sm:$0xf]
  %v70 = vld [vmem:[%s1 + $0x40] sm:$0xf]
  %v71 = vld [vmem:[%s1 + $0x44] sm:$0xf]
  %v72 = vld [vmem:[%s1 + $0x48] sm:$0xf]
  %v73 = vld [vmem:[%s1 + $0x4c] sm:$0xf]
  %v74 = vld [vmem:[%s1 + $0x50] sm:$0xf]
  %v75 = vld [vmem:[%s1 + $0x54] sm:$0xf]
  %v76 = vld [vmem:[%s1 + $0x58] sm:$0xf]
  %v77 = vld [vmem:[%s1 + $0x5c] sm:$0xf]
  %v78 = vld [vmem:[%s2] sm:$0xf]
  %v79 = vld [vmem:[%s2 + $0x4] sm:$0xf]
  %v80 = vld [vmem:[%s2 + $0x8] sm:$0xf]
  %v81 = vld [vmem:[%s2 + $0xc] sm:$0xf]
  %v82 = vld [vmem:[%s2 + $0x10] sm:$0xf]
  %v83 = vld [vmem:[%s2 + $0x14] sm:$0xf]
  %v84 = vld [vmem:[%s2 + $0x18] sm:$0xf]
  %v85 = vld [vmem:[%s2 + $0x1c] sm:$0xf]
  %v86 = vld [vmem:[%s2 + $0x20] sm:$0xf]
  %v87 = vld [vmem:[%s2 + $0x24] sm:$0xf]
  %v88 = vld [vmem:[%s2 + $0x28] sm:$0xf]
  %v89 = vld [vmem:[%s2 + $0x2c] sm:$0xf]
  %v90 = vld [vmem:[%s2 + $0x30] sm:$0xf]
  %v91 = vld [vmem:[%s2 + $0x34] sm:$0xf]
  %v92 = vld [vmem:[%s2 + $0x38] sm:$0xf]
  %v93 = vld [vmem:[%s2 + $0x3c] sm:$0xf]
  %v94 = vld [vmem:[%s2 + $0x40] sm:$0xf]
  %v95 = vld [vmem:[%s2 + $0x44] sm:$0xf]
  %v96 = vld [vmem:[%s2 + $0x48] sm:$0xf]
  %v97 = vld [vmem:[%s2 + $0x4c] sm:$0xf]
  %v98 = vld [vmem:[%s2 + $0x50] sm:$0xf]
  %v99 = vld [vmem:[%s2 + $0x54] sm:$0xf]
  %v100 = vld [vmem:[%s2 + $0x58] sm:$0xf]
  %v101 = vld [vmem:[%s2 + $0x5c] sm:$0xf]
  %v102 = vld [vmem:[%s0] sm:$0xff]
  %v103 = vld [vmem:[%s0 + $0x8] sm:$0xff]
  %v104 = vld [vmem:[%s0 + $0x10] sm:$0xff]
  %v105 = vld [vmem:[%s0 + $0x18] sm:$0xff]
  %v106 = vpack.c.bf16 %v103, %v102
  %v107 = vpack.c.bf16 %v105, %v104
  %v108 = vld [vmem:[%s4] sm:$0x3]
  %vm109 = vcmask 23552
  %v111 = vsel %vm109, %v106, 0
  %v114 = vsel %vm109, %v107, 0
  %vm116 = vcmask 1040384
  %vm117 = vcmask 1041408
  %v118 = vsel %vm116, 4294967295, 65535
  %v119 = vsel %vm117, %v118, 0
  %v121 = vand.u32 %v108, %v119
  %123 = vmatprep.subr.bf16.mxu0 0
  %124 = vmatpush1.bf16.msra.mxu0 %v121
  %125 = vmatprep.subr.bf16.mxu0 0
  %126 = vmatpush1.bf16.msra.mxu0 0
  %127 = vmatprep.subr.bf16.mxu0 0
  %128 = vmatpush1.bf16.msra.mxu0 0
  %129 = vmatprep.subr.bf16.mxu0 0
  %130 = vmatpush1.bf16.msra.mxu0 0
  %131 = vmatprep.subr.bf16.mxu0 0
  %132 = vmatpush1.bf16.msra.mxu0 0
  %133 = vmatprep.subr.bf16.mxu0 0
  %134 = vmatpush1.bf16.msra.mxu0 0
  %135 = vmatprep.subr.bf16.mxu0 0
  %136 = vmatpush1.bf16.msra.mxu0 0
  %137 = vmatprep.subr.bf16.mxu0 0
  %138 = vmatpush1.bf16.msra.mxu0 0
  %139 = vmatprep.subr.bf16.mxu0 0
  %140 = vmatpush1.bf16.msra.mxu0 0
  %141 = vmatprep.subr.bf16.mxu0 0
  %142 = vmatpush1.bf16.msra.mxu0 0
  %143 = vmatprep.subr.bf16.mxu0 0
  %144 = vmatpush1.bf16.msra.mxu0 0
  %145 = vmatprep.subr.bf16.mxu0 0
  %146 = vmatpush1.bf16.msra.mxu0 0
  %147 = vmatprep.subr.bf16.mxu0 0
  %148 = vmatpush1.bf16.msra.mxu0 0
  %149 = vmatprep.subr.bf16.mxu0 0
  %150 = vmatpush1.bf16.msra.mxu0 0
  %151 = vmatprep.subr.bf16.mxu0 0
  %152 = vmatpush1.bf16.msra.mxu0 0
  %153 = vmatprep.subr.bf16.mxu0 0
  %154 = vmatpush1.bf16.msra.mxu0 0
  %155 = vmatprep.mubr.bf16.mxu0 0
  %156 = vmatmul.mubr.bf16.gmra.mrb[0].mxu0 %v111
  %v157 = vpop.f32.mrb[0].mxu0
  %v158 = vadd.f32 0.0, %v157
  %v159 = vpop.f32.mrb[0].mxu0
  %v160 = vpop.f32.mrb[0].mxu0
  %v161 = vadd.f32 0.0, %v160
  %v162 = vpop.f32.mrb[0].mxu0
  %163 = vmatprep.mubr.bf16.mxu0 0
  %164 = vmatmul.mubr.bf16.gmra.mrb[0].mxu0 %v114
  %v165 = vpop.f32.mrb[0].mxu0
  %v166 = vadd.f32 0.0, %v165
  %v167 = vpop.f32.mrb[0].mxu0
  %v168 = vpop.f32.mrb[0].mxu0
  %v169 = vadd.f32 0.0, %v168
  %v170 = vpop.f32.mrb[0].mxu0
  %171 = vdwg.mxu0
  %v172 = vld [vmem:[%s5] sm:$0x3]
  %v197 = vunpack.c.l.b16 %v78
  %v198 = vunpack.c.l.b16 %v79
  %v199 = vunpack.c.l.b16 %v80
  %v200 = vunpack.c.l.b16 %v81
  %v201 = vunpack.c.l.b16 %v82
  %v202 = vunpack.c.l.b16 %v83
  %v203 = vunpack.c.l.b16 %v84
  %v204 = vunpack.c.l.b16 %v85
  %v205 = vunpack.c.l.b16 %v86
  %v206 = vunpack.c.l.b16 %v87
  %v207 = vunpack.c.l.b16 %v88
  %v208 = vunpack.c.l.b16 %v89
  %v209 = vunpack.c.l.b16 %v90
  %v210 = vunpack.c.l.b16 %v91
  %v211 = vunpack.c.l.b16 %v92
  %v212 = vunpack.c.l.b16 %v93
  %v213 = vunpack.c.l.b16 %v94
  %v214 = vunpack.c.l.b16 %v95
  %v215 = vunpack.c.l.b16 %v96
  %v216 = vunpack.c.l.b16 %v97
  %v217 = vunpack.c.l.b16 %v98
  %v218 = vunpack.c.l.b16 %v99
  %v219 = vunpack.c.l.b16 %v100
  %v220 = vunpack.c.l.b16 %v101
  %v221 = vpack.c.b16 %v198, %v197
  %v222 = vpack.c.b16 %v200, %v199
  %v223 = vpack.c.b16 %v202, %v201
  %v224 = vpack.c.b16 %v204, %v203
  %v225 = vpack.c.b16 %v206, %v205
  %v226 = vpack.c.b16 %v208, %v207
  %v227 = vpack.c.b16 %v210, %v209
  %v228 = vpack.c.b16 %v212, %v211
  %v229 = vpack.c.b16 %v214, %v213
  %v230 = vpack.c.b16 %v216, %v215
  %v231 = vpack.c.b16 %v218, %v217
  %v232 = vpack.c.b16 %v220, %v219
  %v234 = vsel %vm109, %v221, 0
  %v237 = vsel %vm109, %v222, 0
  %v240 = vsel %vm109, %v223, 0
  %v243 = vsel %vm109, %v224, 0
  %v246 = vsel %vm109, %v225, 0
  %v249 = vsel %vm109, %v226, 0
  %v252 = vsel %vm109, %v227, 0
  %v255 = vsel %vm109, %v228, 0
  %v258 = vsel %vm109, %v229, 0
  %v261 = vsel %vm109, %v230, 0
  %v264 = vsel %vm109, %v231, 0
  %v267 = vsel %vm109, %v232, 0
  %v270 = vand.u32 %v172, %v119
  %272 = vmatprep.subr.bf16.mxu0 0
  %273 = vmatpush1.bf16.msra.mxu0 %v270
  %274 = vmatprep.subr.bf16.mxu0 0
  %275 = vmatpush1.bf16.msra.mxu0 0
  %276 = vmatprep.subr.bf16.mxu0 0
  %277 = vmatpush1.bf16.msra.mxu0 0
  %278 = vmatprep.subr.bf16.mxu0 0
  %279 = vmatpush1.bf16.msra.mxu0 0
  %280 = vmatprep.subr.bf16.mxu0 0
  %281 = vmatpush1.bf16.msra.mxu0 0
  %282 = vmatprep.subr.bf16.mxu0 0
  %283 = vmatpush1.bf16.msra.mxu0 0
  %284 = vmatprep.subr.bf16.mxu0 0
  %285 = vmatpush1.bf16.msra.mxu0 0
  %286 = vmatprep.subr.bf16.mxu0 0
  %287 = vmatpush1.bf16.msra.mxu0 0
  %288 = vmatprep.subr.bf16.mxu0 0
  %289 = vmatpush1.bf16.msra.mxu0 0
  %290 = vmatprep.subr.bf16.mxu0 0
  %291 = vmatpush1.bf16.msra.mxu0 0
  %292 = vmatprep.subr.bf16.mxu0 0
  %293 = vmatpush1.bf16.msra.mxu0 0
  %294 = vmatprep.subr.bf16.mxu0 0
  %295 = vmatpush1.bf16.msra.mxu0 0
  %296 = vmatprep.subr.bf16.mxu0 0
  %297 = vmatpush1.bf16.msra.mxu0 0
  %298 = vmatprep.subr.bf16.mxu0 0
  %299 = vmatpush1.bf16.msra.mxu0 0
  %300 = vmatprep.subr.bf16.mxu0 0
  %301 = vmatpush1.bf16.msra.mxu0 0
  %302 = vmatprep.subr.bf16.mxu0 0
  %303 = vmatpush1.bf16.msra.mxu0 0
  %304 = vmatprep.mubr.bf16.mxu0 0
  %305 = vmatmul.mubr.bf16.gmra.mrb[0].mxu0 %v234
  %v306 = vpop.f32.mrb[0].mxu0
  %v307 = vadd.f32 0.0, %v306
  %v308 = vpop.f32.mrb[0].mxu0
  %v309 = vpop.f32.mrb[0].mxu0
  %v310 = vadd.f32 0.0, %v309
  %v311 = vpop.f32.mrb[0].mxu0
  %312 = vmatprep.mubr.bf16.mxu0 0
  %313 = vmatmul.mubr.bf16.gmra.mrb[0].mxu0 %v237
  %v314 = vpop.f32.mrb[0].mxu0
  %v315 = vadd.f32 0.0, %v314
  %v316 = vpop.f32.mrb[0].mxu0
  %v317 = vpop.f32.mrb[0].mxu0
  %v318 = vadd.f32 0.0, %v317
  %v319 = vpop.f32.mrb[0].mxu0
  %320 = vmatprep.mubr.bf16.mxu0 0
  %321 = vmatmul.mubr.bf16.gmra.mrb[0].mxu0 %v240
  %v322 = vpop.f32.mrb[0].mxu0
  %v323 = vadd.f32 0.0, %v322
  %v324 = vpop.f32.mrb[0].mxu0
  %v325 = vpop.f32.mrb[0].mxu0
  %v326 = vadd.f32 0.0, %v325
  %v327 = vpop.f32.mrb[0].mxu0
  %328 = vmatprep.mubr.bf16.mxu0 0
  %329 = vmatmul.mubr.bf16.gmra.mrb[0].mxu0 %v243
  %v330 = vpop.f32.mrb[0].mxu0
  %v331 = vadd.f32 0.0, %v330
  %v332 = vpop.f32.mrb[0].mxu0
  %v333 = vpop.f32.mrb[0].mxu0
  %v334 = vadd.f32 0.0, %v333
  %v335 = vpop.f32.mrb[0].mxu0
  %336 = vmatprep.mubr.bf16.mxu0 0
  %337 = vmatmul.mubr.bf16.gmra.mrb[0].mxu0 %v246
  %v338 = vpop.f32.mrb[0].mxu0
  %v339 = vadd.f32 0.0, %v338
  %v340 = vpop.f32.mrb[0].mxu0
  %v341 = vpop.f32.mrb[0].mxu0
  %v342 = vadd.f32 0.0, %v341
  %v343 = vpop.f32.mrb[0].mxu0
  %344 = vmatprep.mubr.bf16.mxu0 0
  %345 = vmatmul.mubr.bf16.gmra.mrb[0].mxu0 %v249
  %v346 = vpop.f32.mrb[0].mxu0
  %v347 = vadd.f32 0.0, %v346
  %v348 = vpop.f32.mrb[0].mxu0
  %v349 = vpop.f32.mrb[0].mxu0
  %v350 = vadd.f32 0.0, %v349
  %v351 = vpop.f32.mrb[0].mxu0
  %352 = vmatprep.mubr.bf16.mxu0 0
  %353 = vmatmul.mubr.bf16.gmra.mrb[0].mxu0 %v252
  %v354 = vpop.f32.mrb[0].mxu0
  %v355 = vadd.f32 0.0, %v354
  %v356 = vpop.f32.mrb[0].mxu0
  %v357 = vpop.f32.mrb[0].mxu0
  %v358 = vadd.f32 0.0, %v357
  %v359 = vpop.f32.mrb[0].mxu0
  %360 = vmatprep.mubr.bf16.mxu0 0
  %361 = vmatmul.mubr.bf16.gmra.mrb[0].mxu0 %v255
  %v362 = vpop.f32.mrb[0].mxu0
  %v363 = vadd.f32 0.0, %v362
  %v364 = vpop.f32.mrb[0].mxu0
  %v365 = vpop.f32.mrb[0].mxu0
  %v366 = vadd.f32 0.0, %v365
  %v367 = vpop.f32.mrb[0].mxu0
  %368 = vmatprep.mubr.bf16.mxu0 0
  %369 = vmatmul.mubr.bf16.gmra.mrb[0].mxu0 %v258
  %v370 = vpop.f32.mrb[0].mxu0
  %v371 = vadd.f32 0.0, %v370
  %v372 = vpop.f32.mrb[0].mxu0
  %v373 = vpop.f32.mrb[0].mxu0
  %v374 = vadd.f32 0.0, %v373
  %v375 = vpop.f32.mrb[0].mxu0
  %376 = vmatprep.mubr.bf16.mxu0 0
  %377 = vmatmul.mubr.bf16.gmra.mrb[0].mxu0 %v261
  %v378 = vpop.f32.mrb[0].mxu0
  %v379 = vadd.f32 0.0, %v378
  %v380 = vpop.f32.mrb[0].mxu0
  %v381 = vpop.f32.mrb[0].mxu0
  %v382 = vadd.f32 0.0, %v381
  %v383 = vpop.f32.mrb[0].mxu0
  %384 = vmatprep.mubr.bf16.mxu0 0
  %385 = vmatmul.mubr.bf16.gmra.mrb[0].mxu0 %v264
  %v386 = vpop.f32.mrb[0].mxu0
  %v387 = vadd.f32 0.0, %v386
  %v388 = vpop.f32.mrb[0].mxu0
  %v389 = vpop.f32.mrb[0].mxu0
  %v390 = vadd.f32 0.0, %v389
  %v391 = vpop.f32.mrb[0].mxu0
  %392 = vmatprep.mubr.bf16.mxu0 0
  %393 = vmatmul.mubr.bf16.gmra.mrb[0].mxu0 %v267
  %v394 = vpop.f32.mrb[0].mxu0
  %v395 = vadd.f32 0.0, %v394
  %v396 = vpop.f32.mrb[0].mxu0
  %v397 = vpop.f32.mrb[0].mxu0
  %v398 = vadd.f32 0.0, %v397
  %v399 = vpop.f32.mrb[0].mxu0
  %400 = vdwg.mxu0
  %v401 = vadd.f32 %v158, %v307
  %v402 = vadd.f32 %v161, %v310
  %v403 = vadd.f32 %v166, %v315
  %v404 = vadd.f32 %v169, %v318
  %v405 = vadd.f32 %v158, %v323
  %v406 = vadd.f32 %v161, %v326
  %v407 = vadd.f32 %v166, %v331
  %v408 = vadd.f32 %v169, %v334
  %v409 = vadd.f32 %v158, %v339
  %v410 = vadd.f32 %v161, %v342
  %v411 = vadd.f32 %v166, %v347
  %v412 = vadd.f32 %v169, %v350
  %v413 = vadd.f32 %v158, %v355
  %v414 = vadd.f32 %v161, %v358
  %v415 = vadd.f32 %v166, %v363
  %v416 = vadd.f32 %v169, %v366
  %v417 = vadd.f32 %v158, %v371
  %v418 = vadd.f32 %v161, %v374
  %v419 = vadd.f32 %v166, %v379
  %v420 = vadd.f32 %v169, %v382
  %v421 = vadd.f32 %v158, %v387
  %v422 = vadd.f32 %v161, %v390
  %v423 = vadd.f32 %v166, %v395
  %v424 = vadd.f32 %v169, %v398
  %v425 = vld [vmem:[%s6] sm:$0x1]
  %v427 = vlaneseq
  %v428 = vshrl.u32 %v427, 7
  %v429 = vsub.s32 0, %v428
  %v430 = vrot.slane %v425, %v429
  %v432 = vadd.f32 %v401, %v430
  %v433 = vadd.f32 %v402, %v430
  %v434 = vadd.f32 %v403, %v430
  %v435 = vadd.f32 %v404, %v430
  %v436 = vadd.f32 %v405, %v430
  %v437 = vadd.f32 %v406, %v430
  %v438 = vadd.f32 %v407, %v430
  %v439 = vadd.f32 %v408, %v430
  %v440 = vadd.f32 %v409, %v430
  %v441 = vadd.f32 %v410, %v430
  %v442 = vadd.f32 %v411, %v430
  %v443 = vadd.f32 %v412, %v430
  %v444 = vadd.f32 %v413, %v430
  %v445 = vadd.f32 %v414, %v430
  %v446 = vadd.f32 %v415, %v430
  %v447 = vadd.f32 %v416, %v430
  %v448 = vadd.f32 %v417, %v430
  %v449 = vadd.f32 %v418, %v430
  %v450 = vadd.f32 %v419, %v430
  %v451 = vadd.f32 %v420, %v430
  %v452 = vadd.f32 %v421, %v430
  %v453 = vadd.f32 %v422, %v430
  %v454 = vadd.f32 %v423, %v430
  %v455 = vadd.f32 %v424, %v430
  %v456 = vmax.f32 %v432, 0.0
  %v457 = vmax.f32 %v433, 0.0
  %v458 = vmax.f32 %v434, 0.0
  %v459 = vmax.f32 %v435, 0.0
  %v460 = vmax.f32 %v436, 0.0
  %v461 = vmax.f32 %v437, 0.0
  %v462 = vmax.f32 %v438, 0.0
  %v463 = vmax.f32 %v439, 0.0
  %v464 = vmax.f32 %v440, 0.0
  %v465 = vmax.f32 %v441, 0.0
  %v466 = vmax.f32 %v442, 0.0
  %v467 = vmax.f32 %v443, 0.0
  %v468 = vmax.f32 %v444, 0.0
  %v469 = vmax.f32 %v445, 0.0
  %v470 = vmax.f32 %v446, 0.0
  %v471 = vmax.f32 %v447, 0.0
  %v472 = vmax.f32 %v448, 0.0
  %v473 = vmax.f32 %v449, 0.0
  %v474 = vmax.f32 %v450, 0.0
  %v475 = vmax.f32 %v451, 0.0
  %v476 = vmax.f32 %v452, 0.0
  %v477 = vmax.f32 %v453, 0.0
  %v478 = vmax.f32 %v454, 0.0
  %v479 = vmax.f32 %v455, 0.0
  %v480 = vpack.c.bf16 %v457, %v456
  %v481 = vpack.c.bf16 %v459, %v458
  %v482 = vpack.c.bf16 %v461, %v460
  %v483 = vpack.c.bf16 %v463, %v462
  %v484 = vpack.c.bf16 %v465, %v464
  %v485 = vpack.c.bf16 %v467, %v466
  %v486 = vpack.c.bf16 %v469, %v468
  %v487 = vpack.c.bf16 %v471, %v470
  %v488 = vpack.c.bf16 %v473, %v472
  %v489 = vpack.c.bf16 %v475, %v474
  %v490 = vpack.c.bf16 %v477, %v476
  %v491 = vpack.c.bf16 %v479, %v478
  %v492 = vld [vmem:[%s7] sm:$0xf]
  %v493 = vld [vmem:[%s7 + $0x4] sm:$0xf]
  %v494 = vld [vmem:[%s7 + $0x8] sm:$0xf]
  %v495 = vld [vmem:[%s7 + $0xc] sm:$0xf]
  %v496 = vld [vmem:[%s7 + $0x10] sm:$0xf]
  %v497 = vld [vmem:[%s7 + $0x14] sm:$0xf]
  %v498 = vld [vmem:[%s7 + $0x18] sm:$0xf]
  %v499 = vld [vmem:[%s7 + $0x1c] sm:$0xf]
  %v500 = vld [vmem:[%s8] sm:$0x1]
  %v502 = vlaneseq
  %v503 = vshrl.u32 %v502, 7
  %v504 = vsub.s32 0, %v503
  %v505 = vrot.slane %v500, %v504
  %v515 = vunpack.c.l.b16 %v492
  %v516 = vunpack.c.l.b16 %v493
  %v517 = vunpack.c.l.b16 %v494
  %v518 = vunpack.c.l.b16 %v495
  %v519 = vunpack.c.l.b16 %v496
  %v520 = vunpack.c.l.b16 %v497
  %v521 = vunpack.c.l.b16 %v498
  %v522 = vunpack.c.l.b16 %v499
  %v523 = vpack.c.b16 %v516, %v515
  %v524 = vpack.c.b16 %v518, %v517
  %v525 = vpack.c.b16 %v520, %v519
  %v526 = vpack.c.b16 %v522, %v521
  %vm531 = vcmask 523264
  %v533 = vsel %vm531, %v480, 0
  %v536 = vsel %vm531, %v481, 0
  %v539 = vsel %vm531, %v482, 0
  %v542 = vsel %vm531, %v483, 0
  %v545 = vsel %vm531, %v484, 0
  %v548 = vsel %vm531, %v485, 0
  %v551 = vsel %vm531, %v486, 0
  %v554 = vsel %vm531, %v487, 0
  %v557 = vsel %vm531, %v488, 0
  %v560 = vsel %vm531, %v489, 0
  %v563 = vsel %vm531, %v490, 0
  %v566 = vsel %vm531, %v491, 0
  %568 = vmatprep.subr.bf16.mxu0 0
  %569 = vmatpush1.bf16.msra.mxu0 %v523
  %570 = vmatprep.subr.bf16.mxu0 0
  %571 = vmatpush1.bf16.msra.mxu0 %v524
  %572 = vmatprep.subr.bf16.mxu0 0
  %573 = vmatpush1.bf16.msra.mxu0 %v525
  %574 = vmatprep.subr.bf16.mxu0 0
  %575 = vmatpush1.bf16.msra.mxu0 %v526
  %576 = vmatprep.subr.bf16.mxu0 0
  %577 = vmatpush1.bf16.msra.mxu0 0
  %578 = vmatprep.subr.bf16.mxu0 0
  %579 = vmatpush1.bf16.msra.mxu0 0
  %580 = vmatprep.subr.bf16.mxu0 0
  %581 = vmatpush1.bf16.msra.mxu0 0
  %582 = vmatprep.subr.bf16.mxu0 0
  %583 = vmatpush1.bf16.msra.mxu0 0
  %584 = vmatprep.subr.bf16.mxu0 0
  %585 = vmatpush1.bf16.msra.mxu0 0
  %586 = vmatprep.subr.bf16.mxu0 0
  %587 = vmatpush1.bf16.msra.mxu0 0
  %588 = vmatprep.subr.bf16.mxu0 0
  %589 = vmatpush1.bf16.msra.mxu0 0
  %590 = vmatprep.subr.bf16.mxu0 0
  %591 = vmatpush1.bf16.msra.mxu0 0
  %592 = vmatprep.subr.bf16.mxu0 0
  %593 = vmatpush1.bf16.msra.mxu0 0
  %594 = vmatprep.subr.bf16.mxu0 0
  %595 = vmatpush1.bf16.msra.mxu0 0
  %596 = vmatprep.subr.bf16.mxu0 0
  %597 = vmatpush1.bf16.msra.mxu0 0
  %598 = vmatprep.subr.bf16.mxu0 0
  %599 = vmatpush1.bf16.msra.mxu0 0
  %600 = vmatprep.mubr.bf16.mxu0 0
  %601 = vmatmul.mubr.bf16.gmra.mrb[0].mxu0 %v533
  %v602 = vpop.f32.mrb[0].mxu0
  %v603 = vadd.f32 %v505, %v602
  %v604 = vpop.f32.mrb[0].mxu0
  %v605 = vpop.f32.mrb[0].mxu0
  %v606 = vadd.f32 %v505, %v605
  %v607 = vpop.f32.mrb[0].mxu0
  %608 = vmatprep.mubr.bf16.mxu0 0
  %609 = vmatmul.mubr.bf16.gmra.mrb[0].mxu0 %v536
  %v610 = vpop.f32.mrb[0].mxu0
  %v611 = vadd.f32 %v505, %v610
  %v612 = vpop.f32.mrb[0].mxu0
  %v613 = vpop.f32.mrb[0].mxu0
  %v614 = vadd.f32 %v505, %v613
  %v615 = vpop.f32.mrb[0].mxu0
  %616 = vmatprep.mubr.bf16.mxu0 0
  %617 = vmatmul.mubr.bf16.gmra.mrb[0].mxu0 %v539
  %v618 = vpop.f32.mrb[0].mxu0
  %v619 = vadd.f32 %v505, %v618
  %v620 = vpop.f32.mrb[0].mxu0
  %v621 = vpop.f32.mrb[0].mxu0
  %v622 = vadd.f32 %v505, %v621
  %v623 = vpop.f32.mrb[0].mxu0
  %624 = vmatprep.mubr.bf16.mxu0 0
  %625 = vmatmul.mubr.bf16.gmra.mrb[0].mxu0 %v542
  %v626 = vpop.f32.mrb[0].mxu0
  %v627 = vadd.f32 %v505, %v626
  %v628 = vpop.f32.mrb[0].mxu0
  %v629 = vpop.f32.mrb[0].mxu0
  %v630 = vadd.f32 %v505, %v629
  %v631 = vpop.f32.mrb[0].mxu0
  %632 = vmatprep.mubr.bf16.mxu0 0
  %633 = vmatmul.mubr.bf16.gmra.mrb[0].mxu0 %v545
  %v634 = vpop.f32.mrb[0].mxu0
  %v635 = vadd.f32 %v505, %v634
  %v636 = vpop.f32.mrb[0].mxu0
  %v637 = vpop.f32.mrb[0].mxu0
  %v638 = vadd.f32 %v505, %v637
  %v639 = vpop.f32.mrb[0].mxu0
  %640 = vmatprep.mubr.bf16.mxu0 0
  %641 = vmatmul.mubr.bf16.gmra.mrb[0].mxu0 %v548
  %v642 = vpop.f32.mrb[0].mxu0
  %v643 = vadd.f32 %v505, %v642
  %v644 = vpop.f32.mrb[0].mxu0
  %v645 = vpop.f32.mrb[0].mxu0
  %v646 = vadd.f32 %v505, %v645
  %v647 = vpop.f32.mrb[0].mxu0
  %648 = vmatprep.mubr.bf16.mxu0 0
  %649 = vmatmul.mubr.bf16.gmra.mrb[0].mxu0 %v551
  %v650 = vpop.f32.mrb[0].mxu0
  %v651 = vadd.f32 %v505, %v650
  %v652 = vpop.f32.mrb[0].mxu0
  %v653 = vpop.f32.mrb[0].mxu0
  %v654 = vadd.f32 %v505, %v653
  %v655 = vpop.f32.mrb[0].mxu0
  %656 = vmatprep.mubr.bf16.mxu0 0
  %657 = vmatmul.mubr.bf16.gmra.mrb[0].mxu0 %v554
  %v658 = vpop.f32.mrb[0].mxu0
  %v659 = vadd.f32 %v505, %v658
  %v660 = vpop.f32.mrb[0].mxu0
  %v661 = vpop.f32.mrb[0].mxu0
  %v662 = vadd.f32 %v505, %v661
  %v663 = vpop.f32.mrb[0].mxu0
  %664 = vmatprep.mubr.bf16.mxu0 0
  %665 = vmatmul.mubr.bf16.gmra.mrb[0].mxu0 %v557
  %v666 = vpop.f32.mrb[0].mxu0
  %v667 = vadd.f32 %v505, %v666
  %v668 = vpop.f32.mrb[0].mxu0
  %v669 = vpop.f32.mrb[0].mxu0
  %v670 = vadd.f32 %v505, %v669
  %v671 = vpop.f32.mrb[0].mxu0
  %672 = vmatprep.mubr.bf16.mxu0 0
  %673 = vmatmul.mubr.bf16.gmra.mrb[0].mxu0 %v560
  %v674 = vpop.f32.mrb[0].mxu0
  %v675 = vadd.f32 %v505, %v674
  %v676 = vpop.f32.mrb[0].mxu0
  %v677 = vpop.f32.mrb[0].mxu0
  %v678 = vadd.f32 %v505, %v677
  %v679 = vpop.f32.mrb[0].mxu0
  %680 = vmatprep.mubr.bf16.mxu0 0
  %681 = vmatmul.mubr.bf16.gmra.mrb[0].mxu0 %v563
  %v682 = vpop.f32.mrb[0].mxu0
  %v683 = vadd.f32 %v505, %v682
  %v684 = vpop.f32.mrb[0].mxu0
  %v685 = vpop.f32.mrb[0].mxu0
  %v686 = vadd.f32 %v505, %v685
  %v687 = vpop.f32.mrb[0].mxu0
  %688 = vmatprep.mubr.bf16.mxu0 0
  %689 = vmatmul.mubr.bf16.gmra.mrb[0].mxu0 %v566
  %v690 = vpop.f32.mrb[0].mxu0
  %v691 = vadd.f32 %v505, %v690
  %v692 = vpop.f32.mrb[0].mxu0
  %v693 = vpop.f32.mrb[0].mxu0
  %v694 = vadd.f32 %v505, %v693
  %v695 = vpop.f32.mrb[0].mxu0
  %696 = vdwg.mxu0
  %v697 = vmax.f32 %v603, %v619
  %v698 = vmax.f32 %v606, %v622
  %v699 = vmax.f32 %v611, %v627
  %v700 = vmax.f32 %v614, %v630
  %v701 = vmax.f32 %v697, %v635
  %v702 = vmax.f32 %v698, %v638
  %v703 = vmax.f32 %v699, %v643
  %v704 = vmax.f32 %v700, %v646
  %v705 = vmax.f32 %v701, %v651
  %v706 = vmax.f32 %v702, %v654
  %v707 = vmax.f32 %v703, %v659
  %v708 = vmax.f32 %v704, %v662
  %v709 = vmax.f32 %v705, %v667
  %v710 = vmax.f32 %v706, %v670
  %v711 = vmax.f32 %v707, %v675
  %v712 = vmax.f32 %v708, %v678
  %v713 = vmax.f32 %v709, %v683
  %v714 = vmax.f32 %v710, %v686
  %v715 = vmax.f32 %v711, %v691
  %v716 = vmax.f32 %v712, %v694
  %v717 = vmax.f32 %v713, 0.0
  %v718 = vmax.f32 %v714, 0.0
  %v719 = vmax.f32 %v715, 0.0
  %v720 = vmax.f32 %v716, 0.0
  %v721 = vpack.c.bf16 %v718, %v717
  %v722 = vpack.c.bf16 %v720, %v719
  %v723 = vld [vmem:[%s9] sm:$0xf]
  %v724 = vld [vmem:[%s9 + $0x4] sm:$0xf]
  %v725 = vld [vmem:[%s9 + $0x8] sm:$0xf]
  %v726 = vld [vmem:[%s9 + $0xc] sm:$0xf]
  %v727 = vld [vmem:[%s9 + $0x10] sm:$0xf]
  %v728 = vld [vmem:[%s9 + $0x14] sm:$0xf]
  %v729 = vld [vmem:[%s9 + $0x18] sm:$0xf]
  %v730 = vld [vmem:[%s9 + $0x1c] sm:$0xf]
  %v739 = vunpack.c.l.b16 %v723
  %v740 = vunpack.c.l.b16 %v724
  %v741 = vunpack.c.l.b16 %v725
  %v742 = vunpack.c.l.b16 %v726
  %v743 = vunpack.c.l.b16 %v727
  %v744 = vunpack.c.l.b16 %v728
  %v745 = vunpack.c.l.b16 %v729
  %v746 = vunpack.c.l.b16 %v730
  %v747 = vpack.c.b16 %v740, %v739
  %v748 = vpack.c.b16 %v742, %v741
  %v749 = vpack.c.b16 %v744, %v743
  %v750 = vpack.c.b16 %v746, %v745
  %v756 = vsel %vm531, %v721, 0
  %v759 = vsel %vm531, %v722, 0
  %761 = vmatprep.subr.bf16.mxu0 0
  %762 = vmatpush1.bf16.msra.mxu0 %v747
  %763 = vmatprep.subr.bf16.mxu0 0
  %764 = vmatpush1.bf16.msra.mxu0 %v748
  %765 = vmatprep.subr.bf16.mxu0 0
  %766 = vmatpush1.bf16.msra.mxu0 %v749
  %767 = vmatprep.subr.bf16.mxu0 0
  %768 = vmatpush1.bf16.msra.mxu0 %v750
  %769 = vmatprep.subr.bf16.mxu0 0
  %770 = vmatpush1.bf16.msra.mxu0 0
  %771 = vmatprep.subr.bf16.mxu0 0
  %772 = vmatpush1.bf16.msra.mxu0 0
  %773 = vmatprep.subr.bf16.mxu0 0
  %774 = vmatpush1.bf16.msra.mxu0 0
  %775 = vmatprep.subr.bf16.mxu0 0
  %776 = vmatpush1.bf16.msra.mxu0 0
  %777 = vmatprep.subr.bf16.mxu0 0
  %778 = vmatpush1.bf16.msra.mxu0 0
  %779 = vmatprep.subr.bf16.mxu0 0
  %780 = vmatpush1.bf16.msra.mxu0 0
  %781 = vmatprep.subr.bf16.mxu0 0
  %782 = vmatpush1.bf16.msra.mxu0 0
  %783 = vmatprep.subr.bf16.mxu0 0
  %784 = vmatpush1.bf16.msra.mxu0 0
  %785 = vmatprep.subr.bf16.mxu0 0
  %786 = vmatpush1.bf16.msra.mxu0 0
  %787 = vmatprep.subr.bf16.mxu0 0
  %788 = vmatpush1.bf16.msra.mxu0 0
  %789 = vmatprep.subr.bf16.mxu0 0
  %790 = vmatpush1.bf16.msra.mxu0 0
  %791 = vmatprep.subr.bf16.mxu0 0
  %792 = vmatpush1.bf16.msra.mxu0 0
  %793 = vmatprep.mubr.bf16.mxu0 0
  %794 = vmatmul.mubr.bf16.gmra.mrb[0].mxu0 %v756
  %v795 = vpop.f32.mrb[0].mxu0
  %v796 = vadd.f32 0.0, %v795
  %v797 = vpop.f32.mrb[0].mxu0
  %v798 = vpop.f32.mrb[0].mxu0
  %v799 = vadd.f32 0.0, %v798
  %v800 = vpop.f32.mrb[0].mxu0
  %801 = vmatprep.mubr.bf16.mxu0 0
  %802 = vmatmul.mubr.bf16.gmra.mrb[0].mxu0 %v759
  %v803 = vpop.f32.mrb[0].mxu0
  %v804 = vadd.f32 0.0, %v803
  %v805 = vpop.f32.mrb[0].mxu0
  %v806 = vpop.f32.mrb[0].mxu0
  %v807 = vadd.f32 0.0, %v806
  %v808 = vpop.f32.mrb[0].mxu0
  %809 = vdwg.mxu0
  %v810 = vpack.c.bf16 %v799, %v796
  %v811 = vpack.c.bf16 %v807, %v804
  %v812 = vld [vmem:[%s10] sm:$0x3]
  %v814 = vand.u32 %v812, %v119
  %816 = vmatprep.subr.bf16.mxu0 0
  %817 = vmatpush1.bf16.msra.mxu0 %v814
  %818 = vmatprep.subr.bf16.mxu0 0
  %819 = vmatpush1.bf16.msra.mxu0 0
  %820 = vmatprep.subr.bf16.mxu0 0
  %821 = vmatpush1.bf16.msra.mxu0 0
  %822 = vmatprep.subr.bf16.mxu0 0
  %823 = vmatpush1.bf16.msra.mxu0 0
  %824 = vmatprep.subr.bf16.mxu0 0
  %825 = vmatpush1.bf16.msra.mxu0 0
  %826 = vmatprep.subr.bf16.mxu0 0
  %827 = vmatpush1.bf16.msra.mxu0 0
  %828 = vmatprep.subr.bf16.mxu0 0
  %829 = vmatpush1.bf16.msra.mxu0 0
  %830 = vmatprep.subr.bf16.mxu0 0
  %831 = vmatpush1.bf16.msra.mxu0 0
  %832 = vmatprep.subr.bf16.mxu0 0
  %833 = vmatpush1.bf16.msra.mxu0 0
  %834 = vmatprep.subr.bf16.mxu0 0
  %835 = vmatpush1.bf16.msra.mxu0 0
  %836 = vmatprep.subr.bf16.mxu0 0
  %837 = vmatpush1.bf16.msra.mxu0 0
  %838 = vmatprep.subr.bf16.mxu0 0
  %839 = vmatpush1.bf16.msra.mxu0 0
  %840 = vmatprep.subr.bf16.mxu0 0
  %841 = vmatpush1.bf16.msra.mxu0 0
  %842 = vmatprep.subr.bf16.mxu0 0
  %843 = vmatpush1.bf16.msra.mxu0 0
  %844 = vmatprep.subr.bf16.mxu0 0
  %845 = vmatpush1.bf16.msra.mxu0 0
  %846 = vmatprep.subr.bf16.mxu0 0
  %847 = vmatpush1.bf16.msra.mxu0 0
  %848 = vmatprep.mubr.bf16.mxu0 0
  %849 = vmatmul.mubr.bf16.gmra.mrb[0].mxu0 %v234
  %v850 = vpop.f32.mrb[0].mxu0
  %v851 = vadd.f32 0.0, %v850
  %v852 = vpop.f32.mrb[0].mxu0
  %v853 = vpop.f32.mrb[0].mxu0
  %v854 = vadd.f32 0.0, %v853
  %v855 = vpop.f32.mrb[0].mxu0
  %856 = vmatprep.mubr.bf16.mxu0 0
  %857 = vmatmul.mubr.bf16.gmra.mrb[0].mxu0 %v237
  %v858 = vpop.f32.mrb[0].mxu0
  %v859 = vadd.f32 0.0, %v858
  %v860 = vpop.f32.mrb[0].mxu0
  %v861 = vpop.f32.mrb[0].mxu0
  %v862 = vadd.f32 0.0, %v861
  %v863 = vpop.f32.mrb[0].mxu0
  %864 = vmatprep.mubr.bf16.mxu0 0
  %865 = vmatmul.mubr.bf16.gmra.mrb[0].mxu0 %v240
  %v866 = vpop.f32.mrb[0].mxu0
  %v867 = vadd.f32 0.0, %v866
  %v868 = vpop.f32.mrb[0].mxu0
  %v869 = vpop.f32.mrb[0].mxu0
  %v870 = vadd.f32 0.0, %v869
  %v871 = vpop.f32.mrb[0].mxu0
  %872 = vmatprep.mubr.bf16.mxu0 0
  %873 = vmatmul.mubr.bf16.gmra.mrb[0].mxu0 %v243
  %v874 = vpop.f32.mrb[0].mxu0
  %v875 = vadd.f32 0.0, %v874
  %v876 = vpop.f32.mrb[0].mxu0
  %v877 = vpop.f32.mrb[0].mxu0
  %v878 = vadd.f32 0.0, %v877
  %v879 = vpop.f32.mrb[0].mxu0
  %880 = vmatprep.mubr.bf16.mxu0 0
  %881 = vmatmul.mubr.bf16.gmra.mrb[0].mxu0 %v246
  %v882 = vpop.f32.mrb[0].mxu0
  %v883 = vadd.f32 0.0, %v882
  %v884 = vpop.f32.mrb[0].mxu0
  %v885 = vpop.f32.mrb[0].mxu0
  %v886 = vadd.f32 0.0, %v885
  %v887 = vpop.f32.mrb[0].mxu0
  %888 = vmatprep.mubr.bf16.mxu0 0
  %889 = vmatmul.mubr.bf16.gmra.mrb[0].mxu0 %v249
  %v890 = vpop.f32.mrb[0].mxu0
  %v891 = vadd.f32 0.0, %v890
  %v892 = vpop.f32.mrb[0].mxu0
  %v893 = vpop.f32.mrb[0].mxu0
  %v894 = vadd.f32 0.0, %v893
  %v895 = vpop.f32.mrb[0].mxu0
  %896 = vmatprep.mubr.bf16.mxu0 0
  %897 = vmatmul.mubr.bf16.gmra.mrb[0].mxu0 %v252
  %v898 = vpop.f32.mrb[0].mxu0
  %v899 = vadd.f32 0.0, %v898
  %v900 = vpop.f32.mrb[0].mxu0
  %v901 = vpop.f32.mrb[0].mxu0
  %v902 = vadd.f32 0.0, %v901
  %v903 = vpop.f32.mrb[0].mxu0
  %904 = vmatprep.mubr.bf16.mxu0 0
  %905 = vmatmul.mubr.bf16.gmra.mrb[0].mxu0 %v255
  %v906 = vpop.f32.mrb[0].mxu0
  %v907 = vadd.f32 0.0, %v906
  %v908 = vpop.f32.mrb[0].mxu0
  %v909 = vpop.f32.mrb[0].mxu0
  %v910 = vadd.f32 0.0, %v909
  %v911 = vpop.f32.mrb[0].mxu0
  %912 = vmatprep.mubr.bf16.mxu0 0
  %913 = vmatmul.mubr.bf16.gmra.mrb[0].mxu0 %v258
  %v914 = vpop.f32.mrb[0].mxu0
  %v915 = vadd.f32 0.0, %v914
  %v916 = vpop.f32.mrb[0].mxu0
  %v917 = vpop.f32.mrb[0].mxu0
  %v918 = vadd.f32 0.0, %v917
  %v919 = vpop.f32.mrb[0].mxu0
  %920 = vmatprep.mubr.bf16.mxu0 0
  %921 = vmatmul.mubr.bf16.gmra.mrb[0].mxu0 %v261
  %v922 = vpop.f32.mrb[0].mxu0
  %v923 = vadd.f32 0.0, %v922
  %v924 = vpop.f32.mrb[0].mxu0
  %v925 = vpop.f32.mrb[0].mxu0
  %v926 = vadd.f32 0.0, %v925
  %v927 = vpop.f32.mrb[0].mxu0
  %928 = vmatprep.mubr.bf16.mxu0 0
  %929 = vmatmul.mubr.bf16.gmra.mrb[0].mxu0 %v264
  %v930 = vpop.f32.mrb[0].mxu0
  %v931 = vadd.f32 0.0, %v930
  %v932 = vpop.f32.mrb[0].mxu0
  %v933 = vpop.f32.mrb[0].mxu0
  %v934 = vadd.f32 0.0, %v933
  %v935 = vpop.f32.mrb[0].mxu0
  %936 = vmatprep.mubr.bf16.mxu0 0
  %937 = vmatmul.mubr.bf16.gmra.mrb[0].mxu0 %v267
  %v938 = vpop.f32.mrb[0].mxu0
  %v939 = vadd.f32 0.0, %v938
  %v940 = vpop.f32.mrb[0].mxu0
  %v941 = vpop.f32.mrb[0].mxu0
  %v942 = vadd.f32 0.0, %v941
  %v943 = vpop.f32.mrb[0].mxu0
  %944 = vdwg.mxu0
  %v969 = vunpack.c.l.b16 %v54
  %v970 = vunpack.c.l.b16 %v55
  %v971 = vunpack.c.l.b16 %v56
  %v972 = vunpack.c.l.b16 %v57
  %v973 = vunpack.c.l.b16 %v58
  %v974 = vunpack.c.l.b16 %v59
  %v975 = vunpack.c.l.b16 %v60
  %v976 = vunpack.c.l.b16 %v61
  %v977 = vunpack.c.l.b16 %v62
  %v978 = vunpack.c.l.b16 %v63
  %v979 = vunpack.c.l.b16 %v64
  %v980 = vunpack.c.l.b16 %v65
  %v981 = vunpack.c.l.b16 %v66
  %v982 = vunpack.c.l.b16 %v67
  %v983 = vunpack.c.l.b16 %v68
  %v984 = vunpack.c.l.b16 %v69
  %v985 = vunpack.c.l.b16 %v70
  %v986 = vunpack.c.l.b16 %v71
  %v987 = vunpack.c.l.b16 %v72
  %v988 = vunpack.c.l.b16 %v73
  %v989 = vunpack.c.l.b16 %v74
  %v990 = vunpack.c.l.b16 %v75
  %v991 = vunpack.c.l.b16 %v76
  %v992 = vunpack.c.l.b16 %v77
  %v993 = vpack.c.b16 %v970, %v969
  %v994 = vpack.c.b16 %v972, %v971
  %v995 = vpack.c.b16 %v974, %v973
  %v996 = vpack.c.b16 %v976, %v975
  %v997 = vpack.c.b16 %v978, %v977
  %v998 = vpack.c.b16 %v980, %v979
  %v999 = vpack.c.b16 %v982, %v981
  %v1000 = vpack.c.b16 %v984, %v983
  %v1001 = vpack.c.b16 %v986, %v985
  %v1002 = vpack.c.b16 %v988, %v987
  %v1003 = vpack.c.b16 %v990, %v989
  %v1004 = vpack.c.b16 %v992, %v991
  %vm1005 = vcmask 261120
  %v1007 = vsel %vm1005, %v993, 0
  %v1010 = vsel %vm1005, %v994, 0
  %v1013 = vsel %vm1005, %v995, 0
  %v1016 = vsel %vm1005, %v996, 0
  %v1019 = vsel %vm1005, %v997, 0
  %v1022 = vsel %vm1005, %v998, 0
  %v1025 = vsel %vm1005, %v999, 0
  %v1028 = vsel %vm1005, %v1000, 0
  %v1031 = vsel %vm1005, %v1001, 0
  %v1034 = vsel %vm1005, %v1002, 0
  %v1037 = vsel %vm1005, %v1003, 0
  %v1040 = vsel %vm1005, %v1004, 0
  %1042 = vmatprep.subr.bf16.mxu0 0
  %1043 = vmatpush1.bf16.msra.mxu0 %v810
  %1044 = vmatprep.subr.bf16.mxu0 0
  %1045 = vmatpush1.bf16.msra.mxu0 %v811
  %1046 = vmatprep.subr.bf16.mxu0 0
  %1047 = vmatpush1.bf16.msra.mxu0 0
  %1048 = vmatprep.subr.bf16.mxu0 0
  %1049 = vmatpush1.bf16.msra.mxu0 0
  %1050 = vmatprep.subr.bf16.mxu0 0
  %1051 = vmatpush1.bf16.msra.mxu0 0
  %1052 = vmatprep.subr.bf16.mxu0 0
  %1053 = vmatpush1.bf16.msra.mxu0 0
  %1054 = vmatprep.subr.bf16.mxu0 0
  %1055 = vmatpush1.bf16.msra.mxu0 0
  %1056 = vmatprep.subr.bf16.mxu0 0
  %1057 = vmatpush1.bf16.msra.mxu0 0
  %1058 = vmatprep.subr.bf16.mxu0 0
  %1059 = vmatpush1.bf16.msra.mxu0 0
  %1060 = vmatprep.subr.bf16.mxu0 0
  %1061 = vmatpush1.bf16.msra.mxu0 0
  %1062 = vmatprep.subr.bf16.mxu0 0
  %1063 = vmatpush1.bf16.msra.mxu0 0
  %1064 = vmatprep.subr.bf16.mxu0 0
  %1065 = vmatpush1.bf16.msra.mxu0 0
  %1066 = vmatprep.subr.bf16.mxu0 0
  %1067 = vmatpush1.bf16.msra.mxu0 0
  %1068 = vmatprep.subr.bf16.mxu0 0
  %1069 = vmatpush1.bf16.msra.mxu0 0
  %1070 = vmatprep.subr.bf16.mxu0 0
  %1071 = vmatpush1.bf16.msra.mxu0 0
  %1072 = vmatprep.subr.bf16.mxu0 0
  %1073 = vmatpush1.bf16.msra.mxu0 0
  %1074 = vmatprep.mubr.bf16.mxu0 0
  %1075 = vmatmul.mubr.bf16.gmra.mrb[0].mxu0 %v1007
  %v1076 = vpop.f32.mrb[0].mxu0
  %v1077 = vadd.f32 %v851, %v1076
  %v1078 = vpop.f32.mrb[0].mxu0
  %v1079 = vpop.f32.mrb[0].mxu0
  %v1080 = vadd.f32 %v854, %v1079
  %v1081 = vpop.f32.mrb[0].mxu0
  %1082 = vmatprep.mubr.bf16.mxu0 0
  %1083 = vmatmul.mubr.bf16.gmra.mrb[0].mxu0 %v1010
  %v1084 = vpop.f32.mrb[0].mxu0
  %v1085 = vadd.f32 %v859, %v1084
  %v1086 = vpop.f32.mrb[0].mxu0
  %v1087 = vpop.f32.mrb[0].mxu0
  %v1088 = vadd.f32 %v862, %v1087
  %v1089 = vpop.f32.mrb[0].mxu0
  %1090 = vmatprep.mubr.bf16.mxu0 0
  %1091 = vmatmul.mubr.bf16.gmra.mrb[0].mxu0 %v1013
  %v1092 = vpop.f32.mrb[0].mxu0
  %v1093 = vadd.f32 %v867, %v1092
  %v1094 = vpop.f32.mrb[0].mxu0
  %v1095 = vpop.f32.mrb[0].mxu0
  %v1096 = vadd.f32 %v870, %v1095
  %v1097 = vpop.f32.mrb[0].mxu0
  %1098 = vmatprep.mubr.bf16.mxu0 0
  %1099 = vmatmul.mubr.bf16.gmra.mrb[0].mxu0 %v1016
  %v1100 = vpop.f32.mrb[0].mxu0
  %v1101 = vadd.f32 %v875, %v1100
  %v1102 = vpop.f32.mrb[0].mxu0
  %v1103 = vpop.f32.mrb[0].mxu0
  %v1104 = vadd.f32 %v878, %v1103
  %v1105 = vpop.f32.mrb[0].mxu0
  %1106 = vmatprep.mubr.bf16.mxu0 0
  %1107 = vmatmul.mubr.bf16.gmra.mrb[0].mxu0 %v1019
  %v1108 = vpop.f32.mrb[0].mxu0
  %v1109 = vadd.f32 %v883, %v1108
  %v1110 = vpop.f32.mrb[0].mxu0
  %v1111 = vpop.f32.mrb[0].mxu0
  %v1112 = vadd.f32 %v886, %v1111
  %v1113 = vpop.f32.mrb[0].mxu0
  %1114 = vmatprep.mubr.bf16.mxu0 0
  %1115 = vmatmul.mubr.bf16.gmra.mrb[0].mxu0 %v1022
  %v1116 = vpop.f32.mrb[0].mxu0
  %v1117 = vadd.f32 %v891, %v1116
  %v1118 = vpop.f32.mrb[0].mxu0
  %v1119 = vpop.f32.mrb[0].mxu0
  %v1120 = vadd.f32 %v894, %v1119
  %v1121 = vpop.f32.mrb[0].mxu0
  %1122 = vmatprep.mubr.bf16.mxu0 0
  %1123 = vmatmul.mubr.bf16.gmra.mrb[0].mxu0 %v1025
  %v1124 = vpop.f32.mrb[0].mxu0
  %v1125 = vadd.f32 %v899, %v1124
  %v1126 = vpop.f32.mrb[0].mxu0
  %v1127 = vpop.f32.mrb[0].mxu0
  %v1128 = vadd.f32 %v902, %v1127
  %v1129 = vpop.f32.mrb[0].mxu0
  %1130 = vmatprep.mubr.bf16.mxu0 0
  %1131 = vmatmul.mubr.bf16.gmra.mrb[0].mxu0 %v1028
  %v1132 = vpop.f32.mrb[0].mxu0
  %v1133 = vadd.f32 %v907, %v1132
  %v1134 = vpop.f32.mrb[0].mxu0
  %v1135 = vpop.f32.mrb[0].mxu0
  %v1136 = vadd.f32 %v910, %v1135
  %v1137 = vpop.f32.mrb[0].mxu0
  %1138 = vmatprep.mubr.bf16.mxu0 0
  %1139 = vmatmul.mubr.bf16.gmra.mrb[0].mxu0 %v1031
  %v1140 = vpop.f32.mrb[0].mxu0
  %v1141 = vadd.f32 %v915, %v1140
  %v1142 = vpop.f32.mrb[0].mxu0
  %v1143 = vpop.f32.mrb[0].mxu0
  %v1144 = vadd.f32 %v918, %v1143
  %v1145 = vpop.f32.mrb[0].mxu0
  %1146 = vmatprep.mubr.bf16.mxu0 0
  %1147 = vmatmul.mubr.bf16.gmra.mrb[0].mxu0 %v1034
  %v1148 = vpop.f32.mrb[0].mxu0
  %v1149 = vadd.f32 %v923, %v1148
  %v1150 = vpop.f32.mrb[0].mxu0
  %v1151 = vpop.f32.mrb[0].mxu0
  %v1152 = vadd.f32 %v926, %v1151
  %v1153 = vpop.f32.mrb[0].mxu0
  %1154 = vmatprep.mubr.bf16.mxu0 0
  %1155 = vmatmul.mubr.bf16.gmra.mrb[0].mxu0 %v1037
  %v1156 = vpop.f32.mrb[0].mxu0
  %v1157 = vadd.f32 %v931, %v1156
  %v1158 = vpop.f32.mrb[0].mxu0
  %v1159 = vpop.f32.mrb[0].mxu0
  %v1160 = vadd.f32 %v934, %v1159
  %v1161 = vpop.f32.mrb[0].mxu0
  %1162 = vmatprep.mubr.bf16.mxu0 0
  %1163 = vmatmul.mubr.bf16.gmra.mrb[0].mxu0 %v1040
  %v1164 = vpop.f32.mrb[0].mxu0
  %v1165 = vadd.f32 %v939, %v1164
  %v1166 = vpop.f32.mrb[0].mxu0
  %v1167 = vpop.f32.mrb[0].mxu0
  %v1168 = vadd.f32 %v942, %v1167
  %v1169 = vpop.f32.mrb[0].mxu0
  %1170 = vdwg.mxu0
  %v1171 = vld [vmem:[%s11] sm:$0x1]
  %v1173 = vlaneseq
  %v1174 = vshrl.u32 %v1173, 7
  %v1175 = vsub.s32 0, %v1174
  %v1176 = vrot.slane %v1171, %v1175
  %v1178 = vadd.f32 %v1077, %v1176
  %v1179 = vadd.f32 %v1080, %v1176
  %v1180 = vadd.f32 %v1085, %v1176
  %v1181 = vadd.f32 %v1088, %v1176
  %v1182 = vadd.f32 %v1093, %v1176
  %v1183 = vadd.f32 %v1096, %v1176
  %v1184 = vadd.f32 %v1101, %v1176
  %v1185 = vadd.f32 %v1104, %v1176
  %v1186 = vadd.f32 %v1109, %v1176
  %v1187 = vadd.f32 %v1112, %v1176
  %v1188 = vadd.f32 %v1117, %v1176
  %v1189 = vadd.f32 %v1120, %v1176
  %v1190 = vadd.f32 %v1125, %v1176
  %v1191 = vadd.f32 %v1128, %v1176
  %v1192 = vadd.f32 %v1133, %v1176
  %v1193 = vadd.f32 %v1136, %v1176
  %v1194 = vadd.f32 %v1141, %v1176
  %v1195 = vadd.f32 %v1144, %v1176
  %v1196 = vadd.f32 %v1149, %v1176
  %v1197 = vadd.f32 %v1152, %v1176
  %v1198 = vadd.f32 %v1157, %v1176
  %v1199 = vadd.f32 %v1160, %v1176
  %v1200 = vadd.f32 %v1165, %v1176
  %v1201 = vadd.f32 %v1168, %v1176
  %v1202 = vmax.f32 %v1178, 0.0
  %v1203 = vmax.f32 %v1179, 0.0
  %v1204 = vmax.f32 %v1180, 0.0
  %v1205 = vmax.f32 %v1181, 0.0
  %v1206 = vmax.f32 %v1182, 0.0
  %v1207 = vmax.f32 %v1183, 0.0
  %v1208 = vmax.f32 %v1184, 0.0
  %v1209 = vmax.f32 %v1185, 0.0
  %v1210 = vmax.f32 %v1186, 0.0
  %v1211 = vmax.f32 %v1187, 0.0
  %v1212 = vmax.f32 %v1188, 0.0
  %v1213 = vmax.f32 %v1189, 0.0
  %v1214 = vmax.f32 %v1190, 0.0
  %v1215 = vmax.f32 %v1191, 0.0
  %v1216 = vmax.f32 %v1192, 0.0
  %v1217 = vmax.f32 %v1193, 0.0
  %v1218 = vmax.f32 %v1194, 0.0
  %v1219 = vmax.f32 %v1195, 0.0
  %v1220 = vmax.f32 %v1196, 0.0
  %v1221 = vmax.f32 %v1197, 0.0
  %v1222 = vmax.f32 %v1198, 0.0
  %v1223 = vmax.f32 %v1199, 0.0
  %v1224 = vmax.f32 %v1200, 0.0
  %v1225 = vmax.f32 %v1201, 0.0
  %v1226 = vpack.c.bf16 %v1203, %v1202
  %v1227 = vpack.c.bf16 %v1205, %v1204
  %v1228 = vpack.c.bf16 %v1207, %v1206
  %v1229 = vpack.c.bf16 %v1209, %v1208
  %v1230 = vpack.c.bf16 %v1211, %v1210
  %v1231 = vpack.c.bf16 %v1213, %v1212
  %v1232 = vpack.c.bf16 %v1215, %v1214
  %v1233 = vpack.c.bf16 %v1217, %v1216
  %v1234 = vpack.c.bf16 %v1219, %v1218
  %v1235 = vpack.c.bf16 %v1221, %v1220
  %v1236 = vpack.c.bf16 %v1223, %v1222
  %v1237 = vpack.c.bf16 %v1225, %v1224
  %v1238 = vld [vmem:[%s12] sm:$0xf]
  %v1239 = vld [vmem:[%s12 + $0x4] sm:$0xf]
  %v1240 = vld [vmem:[%s12 + $0x8] sm:$0xf]
  %v1241 = vld [vmem:[%s12 + $0xc] sm:$0xf]
  %v1242 = vld [vmem:[%s12 + $0x10] sm:$0xf]
  %v1243 = vld [vmem:[%s12 + $0x14] sm:$0xf]
  %v1244 = vld [vmem:[%s12 + $0x18] sm:$0xf]
  %v1245 = vld [vmem:[%s12 + $0x1c] sm:$0xf]
  %v1246 = vld [vmem:[%s13] sm:$0x1]
  %v1248 = vlaneseq
  %v1249 = vshrl.u32 %v1248, 7
  %v1250 = vsub.s32 0, %v1249
  %v1251 = vrot.slane %v1246, %v1250
  %v1261 = vunpack.c.l.b16 %v1238
  %v1262 = vunpack.c.l.b16 %v1239
  %v1263 = vunpack.c.l.b16 %v1240
  %v1264 = vunpack.c.l.b16 %v1241
  %v1265 = vunpack.c.l.b16 %v1242
  %v1266 = vunpack.c.l.b16 %v1243
  %v1267 = vunpack.c.l.b16 %v1244
  %v1268 = vunpack.c.l.b16 %v1245
  %v1269 = vpack.c.b16 %v1262, %v1261
  %v1270 = vpack.c.b16 %v1264, %v1263
  %v1271 = vpack.c.b16 %v1266, %v1265
  %v1272 = vpack.c.b16 %v1268, %v1267
  %v1278 = vsel %vm531, %v1226, 0
  %v1281 = vsel %vm531, %v1227, 0
  %v1284 = vsel %vm531, %v1228, 0
  %v1287 = vsel %vm531, %v1229, 0
  %v1290 = vsel %vm531, %v1230, 0
  %v1293 = vsel %vm531, %v1231, 0
  %v1296 = vsel %vm531, %v1232, 0
  %v1299 = vsel %vm531, %v1233, 0
  %v1302 = vsel %vm531, %v1234, 0
  %v1305 = vsel %vm531, %v1235, 0
  %v1308 = vsel %vm531, %v1236, 0
  %v1311 = vsel %vm531, %v1237, 0
  %1313 = vmatprep.subr.bf16.mxu0 0
  %1314 = vmatpush1.bf16.msra.mxu0 %v1269
  %1315 = vmatprep.subr.bf16.mxu0 0
  %1316 = vmatpush1.bf16.msra.mxu0 %v1270
  %1317 = vmatprep.subr.bf16.mxu0 0
  %1318 = vmatpush1.bf16.msra.mxu0 %v1271
  %1319 = vmatprep.subr.bf16.mxu0 0
  %1320 = vmatpush1.bf16.msra.mxu0 %v1272
  %1321 = vmatprep.subr.bf16.mxu0 0
  %1322 = vmatpush1.bf16.msra.mxu0 0
  %1323 = vmatprep.subr.bf16.mxu0 0
  %1324 = vmatpush1.bf16.msra.mxu0 0
  %1325 = vmatprep.subr.bf16.mxu0 0
  %1326 = vmatpush1.bf16.msra.mxu0 0
  %1327 = vmatprep.subr.bf16.mxu0 0
  %1328 = vmatpush1.bf16.msra.mxu0 0
  %1329 = vmatprep.subr.bf16.mxu0 0
  %1330 = vmatpush1.bf16.msra.mxu0 0
  %1331 = vmatprep.subr.bf16.mxu0 0
  %1332 = vmatpush1.bf16.msra.mxu0 0
  %1333 = vmatprep.subr.bf16.mxu0 0
  %1334 = vmatpush1.bf16.msra.mxu0 0
  %1335 = vmatprep.subr.bf16.mxu0 0
  %1336 = vmatpush1.bf16.msra.mxu0 0
  %1337 = vmatprep.subr.bf16.mxu0 0
  %1338 = vmatpush1.bf16.msra.mxu0 0
  %1339 = vmatprep.subr.bf16.mxu0 0
  %1340 = vmatpush1.bf16.msra.mxu0 0
  %1341 = vmatprep.subr.bf16.mxu0 0
  %1342 = vmatpush1.bf16.msra.mxu0 0
  %1343 = vmatprep.subr.bf16.mxu0 0
  %1344 = vmatpush1.bf16.msra.mxu0 0
  %1345 = vmatprep.mubr.bf16.mxu0 0
  %1346 = vmatmul.mubr.bf16.gmra.mrb[0].mxu0 %v1278
  %v1347 = vpop.f32.mrb[0].mxu0
  %v1348 = vadd.f32 %v1251, %v1347
  %v1349 = vpop.f32.mrb[0].mxu0
  %v1350 = vpop.f32.mrb[0].mxu0
  %v1351 = vadd.f32 %v1251, %v1350
  %v1352 = vpop.f32.mrb[0].mxu0
  %1353 = vmatprep.mubr.bf16.mxu0 0
  %1354 = vmatmul.mubr.bf16.gmra.mrb[0].mxu0 %v1281
  %v1355 = vpop.f32.mrb[0].mxu0
  %v1356 = vadd.f32 %v1251, %v1355
  %v1357 = vpop.f32.mrb[0].mxu0
  %v1358 = vpop.f32.mrb[0].mxu0
  %v1359 = vadd.f32 %v1251, %v1358
  %v1360 = vpop.f32.mrb[0].mxu0
  %1361 = vmatprep.mubr.bf16.mxu0 0
  %1362 = vmatmul.mubr.bf16.gmra.mrb[0].mxu0 %v1284
  %v1363 = vpop.f32.mrb[0].mxu0
  %v1364 = vadd.f32 %v1251, %v1363
  %v1365 = vpop.f32.mrb[0].mxu0
  %v1366 = vpop.f32.mrb[0].mxu0
  %v1367 = vadd.f32 %v1251, %v1366
  %v1368 = vpop.f32.mrb[0].mxu0
  %1369 = vmatprep.mubr.bf16.mxu0 0
  %1370 = vmatmul.mubr.bf16.gmra.mrb[0].mxu0 %v1287
  %v1371 = vpop.f32.mrb[0].mxu0
  %v1372 = vadd.f32 %v1251, %v1371
  %v1373 = vpop.f32.mrb[0].mxu0
  %v1374 = vpop.f32.mrb[0].mxu0
  %v1375 = vadd.f32 %v1251, %v1374
  %v1376 = vpop.f32.mrb[0].mxu0
  %1377 = vmatprep.mubr.bf16.mxu0 0
  %1378 = vmatmul.mubr.bf16.gmra.mrb[0].mxu0 %v1290
  %v1379 = vpop.f32.mrb[0].mxu0
  %v1380 = vadd.f32 %v1251, %v1379
  %v1381 = vpop.f32.mrb[0].mxu0
  %v1382 = vpop.f32.mrb[0].mxu0
  %v1383 = vadd.f32 %v1251, %v1382
  %v1384 = vpop.f32.mrb[0].mxu0
  %1385 = vmatprep.mubr.bf16.mxu0 0
  %1386 = vmatmul.mubr.bf16.gmra.mrb[0].mxu0 %v1293
  %v1387 = vpop.f32.mrb[0].mxu0
  %v1388 = vadd.f32 %v1251, %v1387
  %v1389 = vpop.f32.mrb[0].mxu0
  %v1390 = vpop.f32.mrb[0].mxu0
  %v1391 = vadd.f32 %v1251, %v1390
  %v1392 = vpop.f32.mrb[0].mxu0
  %1393 = vmatprep.mubr.bf16.mxu0 0
  %1394 = vmatmul.mubr.bf16.gmra.mrb[0].mxu0 %v1296
  %v1395 = vpop.f32.mrb[0].mxu0
  %v1396 = vadd.f32 %v1251, %v1395
  %v1397 = vpop.f32.mrb[0].mxu0
  %v1398 = vpop.f32.mrb[0].mxu0
  %v1399 = vadd.f32 %v1251, %v1398
  %v1400 = vpop.f32.mrb[0].mxu0
  %1401 = vmatprep.mubr.bf16.mxu0 0
  %1402 = vmatmul.mubr.bf16.gmra.mrb[0].mxu0 %v1299
  %v1403 = vpop.f32.mrb[0].mxu0
  %v1404 = vadd.f32 %v1251, %v1403
  %v1405 = vpop.f32.mrb[0].mxu0
  %v1406 = vpop.f32.mrb[0].mxu0
  %v1407 = vadd.f32 %v1251, %v1406
  %v1408 = vpop.f32.mrb[0].mxu0
  %1409 = vmatprep.mubr.bf16.mxu0 0
  %1410 = vmatmul.mubr.bf16.gmra.mrb[0].mxu0 %v1302
  %v1411 = vpop.f32.mrb[0].mxu0
  %v1412 = vadd.f32 %v1251, %v1411
  %v1413 = vpop.f32.mrb[0].mxu0
  %v1414 = vpop.f32.mrb[0].mxu0
  %v1415 = vadd.f32 %v1251, %v1414
  %v1416 = vpop.f32.mrb[0].mxu0
  %1417 = vmatprep.mubr.bf16.mxu0 0
  %1418 = vmatmul.mubr.bf16.gmra.mrb[0].mxu0 %v1305
  %v1419 = vpop.f32.mrb[0].mxu0
  %v1420 = vadd.f32 %v1251, %v1419
  %v1421 = vpop.f32.mrb[0].mxu0
  %v1422 = vpop.f32.mrb[0].mxu0
  %v1423 = vadd.f32 %v1251, %v1422
  %v1424 = vpop.f32.mrb[0].mxu0
  %1425 = vmatprep.mubr.bf16.mxu0 0
  %1426 = vmatmul.mubr.bf16.gmra.mrb[0].mxu0 %v1308
  %v1427 = vpop.f32.mrb[0].mxu0
  %v1428 = vadd.f32 %v1251, %v1427
  %v1429 = vpop.f32.mrb[0].mxu0
  %v1430 = vpop.f32.mrb[0].mxu0
  %v1431 = vadd.f32 %v1251, %v1430
  %v1432 = vpop.f32.mrb[0].mxu0
  %1433 = vmatprep.mubr.bf16.mxu0 0
  %1434 = vmatmul.mubr.bf16.gmra.mrb[0].mxu0 %v1311
  %v1435 = vpop.f32.mrb[0].mxu0
  %v1436 = vadd.f32 %v1251, %v1435
  %v1437 = vpop.f32.mrb[0].mxu0
  %v1438 = vpop.f32.mrb[0].mxu0
  %v1439 = vadd.f32 %v1251, %v1438
  %v1440 = vpop.f32.mrb[0].mxu0
  %1441 = vdwg.mxu0
  %v1442 = vmax.f32 %v1348, %v1364
  %v1443 = vmax.f32 %v1351, %v1367
  %v1444 = vmax.f32 %v1356, %v1372
  %v1445 = vmax.f32 %v1359, %v1375
  %v1446 = vmax.f32 %v1442, %v1380
  %v1447 = vmax.f32 %v1443, %v1383
  %v1448 = vmax.f32 %v1444, %v1388
  %v1449 = vmax.f32 %v1445, %v1391
  %v1450 = vmax.f32 %v1446, %v1396
  %v1451 = vmax.f32 %v1447, %v1399
  %v1452 = vmax.f32 %v1448, %v1404
  %v1453 = vmax.f32 %v1449, %v1407
  %v1454 = vmax.f32 %v1450, %v1412
  %v1455 = vmax.f32 %v1451, %v1415
  %v1456 = vmax.f32 %v1452, %v1420
  %v1457 = vmax.f32 %v1453, %v1423
  %v1458 = vmax.f32 %v1454, %v1428
  %v1459 = vmax.f32 %v1455, %v1431
  %v1460 = vmax.f32 %v1456, %v1436
  %v1461 = vmax.f32 %v1457, %v1439
  %v1462 = vmax.f32 %v1458, 0.0
  %v1463 = vmax.f32 %v1459, 0.0
  %v1464 = vmax.f32 %v1460, 0.0
  %v1465 = vmax.f32 %v1461, 0.0
  %v1466 = vpack.c.bf16 %v1463, %v1462
  %v1467 = vpack.c.bf16 %v1465, %v1464
  %v1469 = vsel %vm531, %v1466, 0
  %v1472 = vsel %vm531, %v1467, 0
  %1474 = vmatprep.subr.bf16.mxu0 0
  %1475 = vmatpush1.bf16.msra.mxu0 %v747
  %1476 = vmatprep.subr.bf16.mxu0 0
  %1477 = vmatpush1.bf16.msra.mxu0 %v748
  %1478 = vmatprep.subr.bf16.mxu0 0
  %1479 = vmatpush1.bf16.msra.mxu0 %v749
  %1480 = vmatprep.subr.bf16.mxu0 0
  %1481 = vmatpush1.bf16.msra.mxu0 %v750
  %1482 = vmatprep.subr.bf16.mxu0 0
  %1483 = vmatpush1.bf16.msra.mxu0 0
  %1484 = vmatprep.subr.bf16.mxu0 0
  %1485 = vmatpush1.bf16.msra.mxu0 0
  %1486 = vmatprep.subr.bf16.mxu0 0
  %1487 = vmatpush1.bf16.msra.mxu0 0
  %1488 = vmatprep.subr.bf16.mxu0 0
  %1489 = vmatpush1.bf16.msra.mxu0 0
  %1490 = vmatprep.subr.bf16.mxu0 0
  %1491 = vmatpush1.bf16.msra.mxu0 0
  %1492 = vmatprep.subr.bf16.mxu0 0
  %1493 = vmatpush1.bf16.msra.mxu0 0
  %1494 = vmatprep.subr.bf16.mxu0 0
  %1495 = vmatpush1.bf16.msra.mxu0 0
  %1496 = vmatprep.subr.bf16.mxu0 0
  %1497 = vmatpush1.bf16.msra.mxu0 0
  %1498 = vmatprep.subr.bf16.mxu0 0
  %1499 = vmatpush1.bf16.msra.mxu0 0
  %1500 = vmatprep.subr.bf16.mxu0 0
  %1501 = vmatpush1.bf16.msra.mxu0 0
  %1502 = vmatprep.subr.bf16.mxu0 0
  %1503 = vmatpush1.bf16.msra.mxu0 0
  %1504 = vmatprep.subr.bf16.mxu0 0
  %1505 = vmatpush1.bf16.msra.mxu0 0
  %1506 = vmatprep.mubr.bf16.mxu0 0
  %1507 = vmatmul.mubr.bf16.gmra.mrb[0].mxu0 %v1469
  %v1508 = vpop.f32.mrb[0].mxu0
  %v1509 = vadd.f32 0.0, %v1508
  %v1510 = vpop.f32.mrb[0].mxu0
  %v1511 = vpop.f32.mrb[0].mxu0
  %v1512 = vadd.f32 0.0, %v1511
  %v1513 = vpop.f32.mrb[0].mxu0
  %1514 = vmatprep.mubr.bf16.mxu0 0
  %1515 = vmatmul.mubr.bf16.gmra.mrb[0].mxu0 %v1472
  %v1516 = vpop.f32.mrb[0].mxu0
  %v1517 = vadd.f32 0.0, %v1516
  %v1518 = vpop.f32.mrb[0].mxu0
  %v1519 = vpop.f32.mrb[0].mxu0
  %v1520 = vadd.f32 0.0, %v1519
  %v1521 = vpop.f32.mrb[0].mxu0
  %1522 = vdwg.mxu0
  %v1523 = vpack.c.bf16 %v1512, %v1509
  %v1524 = vpack.c.bf16 %v1520, %v1517
  %1525 = vmatprep.subr.bf16.mxu0 0
  %1526 = vmatpush1.bf16.msra.mxu0 %v1523
  %1527 = vmatprep.subr.bf16.mxu0 0
  %1528 = vmatpush1.bf16.msra.mxu0 %v1524
  %1529 = vmatprep.subr.bf16.mxu0 0
  %1530 = vmatpush1.bf16.msra.mxu0 0
  %1531 = vmatprep.subr.bf16.mxu0 0
  %1532 = vmatpush1.bf16.msra.mxu0 0
  %1533 = vmatprep.subr.bf16.mxu0 0
  %1534 = vmatpush1.bf16.msra.mxu0 0
  %1535 = vmatprep.subr.bf16.mxu0 0
  %1536 = vmatpush1.bf16.msra.mxu0 0
  %1537 = vmatprep.subr.bf16.mxu0 0
  %1538 = vmatpush1.bf16.msra.mxu0 0
  %1539 = vmatprep.subr.bf16.mxu0 0
  %1540 = vmatpush1.bf16.msra.mxu0 0
  %1541 = vmatprep.subr.bf16.mxu0 0
  %1542 = vmatpush1.bf16.msra.mxu0 0
  %1543 = vmatprep.subr.bf16.mxu0 0
  %1544 = vmatpush1.bf16.msra.mxu0 0
  %1545 = vmatprep.subr.bf16.mxu0 0
  %1546 = vmatpush1.bf16.msra.mxu0 0
  %1547 = vmatprep.subr.bf16.mxu0 0
  %1548 = vmatpush1.bf16.msra.mxu0 0
  %1549 = vmatprep.subr.bf16.mxu0 0
  %1550 = vmatpush1.bf16.msra.mxu0 0
  %1551 = vmatprep.subr.bf16.mxu0 0
  %1552 = vmatpush1.bf16.msra.mxu0 0
  %1553 = vmatprep.subr.bf16.mxu0 0
  %1554 = vmatpush1.bf16.msra.mxu0 0
  %1555 = vmatprep.subr.bf16.mxu0 0
  %1556 = vmatpush1.bf16.msra.mxu0 0
  %1557 = vmatprep.mubr.bf16.mxu0 0
  %1558 = vmatmul.mubr.bf16.gmra.mrb[0].mxu0 %v1007
  %v1559 = vpop.f32.mrb[0].mxu0
  %v1560 = vadd.f32 %v851, %v1559
  %v1561 = vpop.f32.mrb[0].mxu0
  %v1562 = vpop.f32.mrb[0].mxu0
  %v1563 = vadd.f32 %v854, %v1562
  %v1564 = vpop.f32.mrb[0].mxu0
  %1565 = vmatprep.mubr.bf16.mxu0 0
  %1566 = vmatmul.mubr.bf16.gmra.mrb[0].mxu0 %v1010
  %v1567 = vpop.f32.mrb[0].mxu0
  %v1568 = vadd.f32 %v859, %v1567
  %v1569 = vpop.f32.mrb[0].mxu0
  %v1570 = vpop.f32.mrb[0].mxu0
  %v1571 = vadd.f32 %v862, %v1570
  %v1572 = vpop.f32.mrb[0].mxu0
  %1573 = vmatprep.mubr.bf16.mxu0 0
  %1574 = vmatmul.mubr.bf16.gmra.mrb[0].mxu0 %v1013
  %v1575 = vpop.f32.mrb[0].mxu0
  %v1576 = vadd.f32 %v867, %v1575
  %v1577 = vpop.f32.mrb[0].mxu0
  %v1578 = vpop.f32.mrb[0].mxu0
  %v1579 = vadd.f32 %v870, %v1578
  %v1580 = vpop.f32.mrb[0].mxu0
  %1581 = vmatprep.mubr.bf16.mxu0 0
  %1582 = vmatmul.mubr.bf16.gmra.mrb[0].mxu0 %v1016
  %v1583 = vpop.f32.mrb[0].mxu0
  %v1584 = vadd.f32 %v875, %v1583
  %v1585 = vpop.f32.mrb[0].mxu0
  %v1586 = vpop.f32.mrb[0].mxu0
  %v1587 = vadd.f32 %v878, %v1586
  %v1588 = vpop.f32.mrb[0].mxu0
  %1589 = vmatprep.mubr.bf16.mxu0 0
  %1590 = vmatmul.mubr.bf16.gmra.mrb[0].mxu0 %v1019
  %v1591 = vpop.f32.mrb[0].mxu0
  %v1592 = vadd.f32 %v883, %v1591
  %v1593 = vpop.f32.mrb[0].mxu0
  %v1594 = vpop.f32.mrb[0].mxu0
  %v1595 = vadd.f32 %v886, %v1594
  %v1596 = vpop.f32.mrb[0].mxu0
  %1597 = vmatprep.mubr.bf16.mxu0 0
  %1598 = vmatmul.mubr.bf16.gmra.mrb[0].mxu0 %v1022
  %v1599 = vpop.f32.mrb[0].mxu0
  %v1600 = vadd.f32 %v891, %v1599
  %v1601 = vpop.f32.mrb[0].mxu0
  %v1602 = vpop.f32.mrb[0].mxu0
  %v1603 = vadd.f32 %v894, %v1602
  %v1604 = vpop.f32.mrb[0].mxu0
  %1605 = vmatprep.mubr.bf16.mxu0 0
  %1606 = vmatmul.mubr.bf16.gmra.mrb[0].mxu0 %v1025
  %v1607 = vpop.f32.mrb[0].mxu0
  %v1608 = vadd.f32 %v899, %v1607
  %v1609 = vpop.f32.mrb[0].mxu0
  %v1610 = vpop.f32.mrb[0].mxu0
  %v1611 = vadd.f32 %v902, %v1610
  %v1612 = vpop.f32.mrb[0].mxu0
  %1613 = vmatprep.mubr.bf16.mxu0 0
  %1614 = vmatmul.mubr.bf16.gmra.mrb[0].mxu0 %v1028
  %v1615 = vpop.f32.mrb[0].mxu0
  %v1616 = vadd.f32 %v907, %v1615
  %v1617 = vpop.f32.mrb[0].mxu0
  %v1618 = vpop.f32.mrb[0].mxu0
  %v1619 = vadd.f32 %v910, %v1618
  %v1620 = vpop.f32.mrb[0].mxu0
  %1621 = vmatprep.mubr.bf16.mxu0 0
  %1622 = vmatmul.mubr.bf16.gmra.mrb[0].mxu0 %v1031
  %v1623 = vpop.f32.mrb[0].mxu0
  %v1624 = vadd.f32 %v915, %v1623
  %v1625 = vpop.f32.mrb[0].mxu0
  %v1626 = vpop.f32.mrb[0].mxu0
  %v1627 = vadd.f32 %v918, %v1626
  %v1628 = vpop.f32.mrb[0].mxu0
  %1629 = vmatprep.mubr.bf16.mxu0 0
  %1630 = vmatmul.mubr.bf16.gmra.mrb[0].mxu0 %v1034
  %v1631 = vpop.f32.mrb[0].mxu0
  %v1632 = vadd.f32 %v923, %v1631
  %v1633 = vpop.f32.mrb[0].mxu0
  %v1634 = vpop.f32.mrb[0].mxu0
  %v1635 = vadd.f32 %v926, %v1634
  %v1636 = vpop.f32.mrb[0].mxu0
  %1637 = vmatprep.mubr.bf16.mxu0 0
  %1638 = vmatmul.mubr.bf16.gmra.mrb[0].mxu0 %v1037
  %v1639 = vpop.f32.mrb[0].mxu0
  %v1640 = vadd.f32 %v931, %v1639
  %v1641 = vpop.f32.mrb[0].mxu0
  %v1642 = vpop.f32.mrb[0].mxu0
  %v1643 = vadd.f32 %v934, %v1642
  %v1644 = vpop.f32.mrb[0].mxu0
  %1645 = vmatprep.mubr.bf16.mxu0 0
  %1646 = vmatmul.mubr.bf16.gmra.mrb[0].mxu0 %v1040
  %v1647 = vpop.f32.mrb[0].mxu0
  %v1648 = vadd.f32 %v939, %v1647
  %v1649 = vpop.f32.mrb[0].mxu0
  %v1650 = vpop.f32.mrb[0].mxu0
  %v1651 = vadd.f32 %v942, %v1650
  %v1652 = vpop.f32.mrb[0].mxu0
  %1653 = vdwg.mxu0
  %v1654 = vadd.f32 %v1560, %v1176
  %v1655 = vadd.f32 %v1563, %v1176
  %v1656 = vadd.f32 %v1568, %v1176
  %v1657 = vadd.f32 %v1571, %v1176
  %v1658 = vadd.f32 %v1576, %v1176
  %v1659 = vadd.f32 %v1579, %v1176
  %v1660 = vadd.f32 %v1584, %v1176
  %v1661 = vadd.f32 %v1587, %v1176
  %v1662 = vadd.f32 %v1592, %v1176
  %v1663 = vadd.f32 %v1595, %v1176
  %v1664 = vadd.f32 %v1600, %v1176
  %v1665 = vadd.f32 %v1603, %v1176
  %v1666 = vadd.f32 %v1608, %v1176
  %v1667 = vadd.f32 %v1611, %v1176
  %v1668 = vadd.f32 %v1616, %v1176
  %v1669 = vadd.f32 %v1619, %v1176
  %v1670 = vadd.f32 %v1624, %v1176
  %v1671 = vadd.f32 %v1627, %v1176
  %v1672 = vadd.f32 %v1632, %v1176
  %v1673 = vadd.f32 %v1635, %v1176
  %v1674 = vadd.f32 %v1640, %v1176
  %v1675 = vadd.f32 %v1643, %v1176
  %v1676 = vadd.f32 %v1648, %v1176
  %v1677 = vadd.f32 %v1651, %v1176
  %v1678 = vmax.f32 %v1654, 0.0
  %v1679 = vmax.f32 %v1655, 0.0
  %v1680 = vmax.f32 %v1656, 0.0
  %v1681 = vmax.f32 %v1657, 0.0
  %v1682 = vmax.f32 %v1658, 0.0
  %v1683 = vmax.f32 %v1659, 0.0
  %v1684 = vmax.f32 %v1660, 0.0
  %v1685 = vmax.f32 %v1661, 0.0
  %v1686 = vmax.f32 %v1662, 0.0
  %v1687 = vmax.f32 %v1663, 0.0
  %v1688 = vmax.f32 %v1664, 0.0
  %v1689 = vmax.f32 %v1665, 0.0
  %v1690 = vmax.f32 %v1666, 0.0
  %v1691 = vmax.f32 %v1667, 0.0
  %v1692 = vmax.f32 %v1668, 0.0
  %v1693 = vmax.f32 %v1669, 0.0
  %v1694 = vmax.f32 %v1670, 0.0
  %v1695 = vmax.f32 %v1671, 0.0
  %v1696 = vmax.f32 %v1672, 0.0
  %v1697 = vmax.f32 %v1673, 0.0
  %v1698 = vmax.f32 %v1674, 0.0
  %v1699 = vmax.f32 %v1675, 0.0
  %v1700 = vmax.f32 %v1676, 0.0
  %v1701 = vmax.f32 %v1677, 0.0
  %v1702 = vpack.c.bf16 %v1679, %v1678
  %v1703 = vpack.c.bf16 %v1681, %v1680
  %v1704 = vpack.c.bf16 %v1683, %v1682
  %v1705 = vpack.c.bf16 %v1685, %v1684
  %v1706 = vpack.c.bf16 %v1687, %v1686
  %v1707 = vpack.c.bf16 %v1689, %v1688
  %v1708 = vpack.c.bf16 %v1691, %v1690
  %v1709 = vpack.c.bf16 %v1693, %v1692
  %v1710 = vpack.c.bf16 %v1695, %v1694
  %v1711 = vpack.c.bf16 %v1697, %v1696
  %v1712 = vpack.c.bf16 %v1699, %v1698
  %v1713 = vpack.c.bf16 %v1701, %v1700
  %v1715 = vsel %vm531, %v1702, 0
  %v1718 = vsel %vm531, %v1703, 0
  %v1721 = vsel %vm531, %v1704, 0
  %v1724 = vsel %vm531, %v1705, 0
  %v1727 = vsel %vm531, %v1706, 0
  %v1730 = vsel %vm531, %v1707, 0
  %v1733 = vsel %vm531, %v1708, 0
  %v1736 = vsel %vm531, %v1709, 0
  %v1739 = vsel %vm531, %v1710, 0
  %v1742 = vsel %vm531, %v1711, 0
  %v1745 = vsel %vm531, %v1712, 0
  %v1748 = vsel %vm531, %v1713, 0
  %1750 = vmatprep.subr.bf16.mxu0 0
  %1751 = vmatpush1.bf16.msra.mxu0 %v1269
  %1752 = vmatprep.subr.bf16.mxu0 0
  %1753 = vmatpush1.bf16.msra.mxu0 %v1270
  %1754 = vmatprep.subr.bf16.mxu0 0
  %1755 = vmatpush1.bf16.msra.mxu0 %v1271
  %1756 = vmatprep.subr.bf16.mxu0 0
  %1757 = vmatpush1.bf16.msra.mxu0 %v1272
  %1758 = vmatprep.subr.bf16.mxu0 0
  %1759 = vmatpush1.bf16.msra.mxu0 0
  %1760 = vmatprep.subr.bf16.mxu0 0
  %1761 = vmatpush1.bf16.msra.mxu0 0
  %1762 = vmatprep.subr.bf16.mxu0 0
  %1763 = vmatpush1.bf16.msra.mxu0 0
  %1764 = vmatprep.subr.bf16.mxu0 0
  %1765 = vmatpush1.bf16.msra.mxu0 0
  %1766 = vmatprep.subr.bf16.mxu0 0
  %1767 = vmatpush1.bf16.msra.mxu0 0
  %1768 = vmatprep.subr.bf16.mxu0 0
  %1769 = vmatpush1.bf16.msra.mxu0 0
  %1770 = vmatprep.subr.bf16.mxu0 0
  %1771 = vmatpush1.bf16.msra.mxu0 0
  %1772 = vmatprep.subr.bf16.mxu0 0
  %1773 = vmatpush1.bf16.msra.mxu0 0
  %1774 = vmatprep.subr.bf16.mxu0 0
  %1775 = vmatpush1.bf16.msra.mxu0 0
  %1776 = vmatprep.subr.bf16.mxu0 0
  %1777 = vmatpush1.bf16.msra.mxu0 0
  %1778 = vmatprep.subr.bf16.mxu0 0
  %1779 = vmatpush1.bf16.msra.mxu0 0
  %1780 = vmatprep.subr.bf16.mxu0 0
  %1781 = vmatpush1.bf16.msra.mxu0 0
  %1782 = vmatprep.mubr.bf16.mxu0 0
  %1783 = vmatmul.mubr.bf16.gmra.mrb[0].mxu0 %v1715
  %v1784 = vpop.f32.mrb[0].mxu0
  %v1785 = vadd.f32 %v1251, %v1784
  %v1786 = vpop.f32.mrb[0].mxu0
  %v1787 = vpop.f32.mrb[0].mxu0
  %v1788 = vadd.f32 %v1251, %v1787
  %v1789 = vpop.f32.mrb[0].mxu0
  %1790 = vmatprep.mubr.bf16.mxu0 0
  %1791 = vmatmul.mubr.bf16.gmra.mrb[0].mxu0 %v1718
  %v1792 = vpop.f32.mrb[0].mxu0
  %v1793 = vadd.f32 %v1251, %v1792
  %v1794 = vpop.f32.mrb[0].mxu0
  %v1795 = vpop.f32.mrb[0].mxu0
  %v1796 = vadd.f32 %v1251, %v1795
  %v1797 = vpop.f32.mrb[0].mxu0
  %1798 = vmatprep.mubr.bf16.mxu0 0
  %1799 = vmatmul.mubr.bf16.gmra.mrb[0].mxu0 %v1721
  %v1800 = vpop.f32.mrb[0].mxu0
  %v1801 = vadd.f32 %v1251, %v1800
  %v1802 = vpop.f32.mrb[0].mxu0
  %v1803 = vpop.f32.mrb[0].mxu0
  %v1804 = vadd.f32 %v1251, %v1803
  %v1805 = vpop.f32.mrb[0].mxu0
  %1806 = vmatprep.mubr.bf16.mxu0 0
  %1807 = vmatmul.mubr.bf16.gmra.mrb[0].mxu0 %v1724
  %v1808 = vpop.f32.mrb[0].mxu0
  %v1809 = vadd.f32 %v1251, %v1808
  %v1810 = vpop.f32.mrb[0].mxu0
  %v1811 = vpop.f32.mrb[0].mxu0
  %v1812 = vadd.f32 %v1251, %v1811
  %v1813 = vpop.f32.mrb[0].mxu0
  %1814 = vmatprep.mubr.bf16.mxu0 0
  %1815 = vmatmul.mubr.bf16.gmra.mrb[0].mxu0 %v1727
  %v1816 = vpop.f32.mrb[0].mxu0
  %v1817 = vadd.f32 %v1251, %v1816
  %v1818 = vpop.f32.mrb[0].mxu0
  %v1819 = vpop.f32.mrb[0].mxu0
  %v1820 = vadd.f32 %v1251, %v1819
  %v1821 = vpop.f32.mrb[0].mxu0
  %1822 = vmatprep.mubr.bf16.mxu0 0
  %1823 = vmatmul.mubr.bf16.gmra.mrb[0].mxu0 %v1730
  %v1824 = vpop.f32.mrb[0].mxu0
  %v1825 = vadd.f32 %v1251, %v1824
  %v1826 = vpop.f32.mrb[0].mxu0
  %v1827 = vpop.f32.mrb[0].mxu0
  %v1828 = vadd.f32 %v1251, %v1827
  %v1829 = vpop.f32.mrb[0].mxu0
  %1830 = vmatprep.mubr.bf16.mxu0 0
  %1831 = vmatmul.mubr.bf16.gmra.mrb[0].mxu0 %v1733
  %v1832 = vpop.f32.mrb[0].mxu0
  %v1833 = vadd.f32 %v1251, %v1832
  %v1834 = vpop.f32.mrb[0].mxu0
  %v1835 = vpop.f32.mrb[0].mxu0
  %v1836 = vadd.f32 %v1251, %v1835
  %v1837 = vpop.f32.mrb[0].mxu0
  %1838 = vmatprep.mubr.bf16.mxu0 0
  %1839 = vmatmul.mubr.bf16.gmra.mrb[0].mxu0 %v1736
  %v1840 = vpop.f32.mrb[0].mxu0
  %v1841 = vadd.f32 %v1251, %v1840
  %v1842 = vpop.f32.mrb[0].mxu0
  %v1843 = vpop.f32.mrb[0].mxu0
  %v1844 = vadd.f32 %v1251, %v1843
  %v1845 = vpop.f32.mrb[0].mxu0
  %1846 = vmatprep.mubr.bf16.mxu0 0
  %1847 = vmatmul.mubr.bf16.gmra.mrb[0].mxu0 %v1739
  %v1848 = vpop.f32.mrb[0].mxu0
  %v1849 = vadd.f32 %v1251, %v1848
  %v1850 = vpop.f32.mrb[0].mxu0
  %v1851 = vpop.f32.mrb[0].mxu0
  %v1852 = vadd.f32 %v1251, %v1851
  %v1853 = vpop.f32.mrb[0].mxu0
  %1854 = vmatprep.mubr.bf16.mxu0 0
  %1855 = vmatmul.mubr.bf16.gmra.mrb[0].mxu0 %v1742
  %v1856 = vpop.f32.mrb[0].mxu0
  %v1857 = vadd.f32 %v1251, %v1856
  %v1858 = vpop.f32.mrb[0].mxu0
  %v1859 = vpop.f32.mrb[0].mxu0
  %v1860 = vadd.f32 %v1251, %v1859
  %v1861 = vpop.f32.mrb[0].mxu0
  %1862 = vmatprep.mubr.bf16.mxu0 0
  %1863 = vmatmul.mubr.bf16.gmra.mrb[0].mxu0 %v1745
  %v1864 = vpop.f32.mrb[0].mxu0
  %v1865 = vadd.f32 %v1251, %v1864
  %v1866 = vpop.f32.mrb[0].mxu0
  %v1867 = vpop.f32.mrb[0].mxu0
  %v1868 = vadd.f32 %v1251, %v1867
  %v1869 = vpop.f32.mrb[0].mxu0
  %1870 = vmatprep.mubr.bf16.mxu0 0
  %1871 = vmatmul.mubr.bf16.gmra.mrb[0].mxu0 %v1748
  %v1872 = vpop.f32.mrb[0].mxu0
  %v1873 = vadd.f32 %v1251, %v1872
  %v1874 = vpop.f32.mrb[0].mxu0
  %v1875 = vpop.f32.mrb[0].mxu0
  %v1876 = vadd.f32 %v1251, %v1875
  %v1877 = vpop.f32.mrb[0].mxu0
  %1878 = vdwg.mxu0
  %v1879 = vmax.f32 %v1785, %v1801
  %v1880 = vmax.f32 %v1788, %v1804
  %v1881 = vmax.f32 %v1793, %v1809
  %v1882 = vmax.f32 %v1796, %v1812
  %v1883 = vmax.f32 %v1879, %v1817
  %v1884 = vmax.f32 %v1880, %v1820
  %v1885 = vmax.f32 %v1881, %v1825
  %v1886 = vmax.f32 %v1882, %v1828
  %v1887 = vmax.f32 %v1883, %v1833
  %v1888 = vmax.f32 %v1884, %v1836
  %v1889 = vmax.f32 %v1885, %v1841
  %v1890 = vmax.f32 %v1886, %v1844
  %v1891 = vmax.f32 %v1887, %v1849
  %v1892 = vmax.f32 %v1888, %v1852
  %v1893 = vmax.f32 %v1889, %v1857
  %v1894 = vmax.f32 %v1890, %v1860
  %v1895 = vmax.f32 %v1891, %v1865
  %v1896 = vmax.f32 %v1892, %v1868
  %v1897 = vmax.f32 %v1893, %v1873
  %v1898 = vmax.f32 %v1894, %v1876
  %v1899 = vmax.f32 %v1895, 0.0
  %v1900 = vmax.f32 %v1896, 0.0
  %v1901 = vmax.f32 %v1897, 0.0
  %v1902 = vmax.f32 %v1898, 0.0
  %v1903 = vld [vmem:[%s3] sm:$0x1]
  %v1904 = vpack.c.bf16 %v1900, %v1899
  %v1905 = vpack.c.bf16 %v1902, %v1901
  %v1907 = vsel %vm1005, %v1903, 0
  %1909 = vmatprep.subr.bf16.mxu0 0
  %1910 = vmatpush1.bf16.msra.mxu0 %v1904
  %1911 = vmatprep.subr.bf16.mxu0 0
  %1912 = vmatpush1.bf16.msra.mxu0 %v1905
  %1913 = vmatprep.subr.bf16.mxu0 0
  %1914 = vmatpush1.bf16.msra.mxu0 0
  %1915 = vmatprep.subr.bf16.mxu0 0
  %1916 = vmatpush1.bf16.msra.mxu0 0
  %1917 = vmatprep.subr.bf16.mxu0 0
  %1918 = vmatpush1.bf16.msra.mxu0 0
  %1919 = vmatprep.subr.bf16.mxu0 0
  %1920 = vmatpush1.bf16.msra.mxu0 0
  %1921 = vmatprep.subr.bf16.mxu0 0
  %1922 = vmatpush1.bf16.msra.mxu0 0
  %1923 = vmatprep.subr.bf16.mxu0 0
  %1924 = vmatpush1.bf16.msra.mxu0 0
  %1925 = vmatprep.subr.bf16.mxu0 0
  %1926 = vmatpush1.bf16.msra.mxu0 0
  %1927 = vmatprep.subr.bf16.mxu0 0
  %1928 = vmatpush1.bf16.msra.mxu0 0
  %1929 = vmatprep.subr.bf16.mxu0 0
  %1930 = vmatpush1.bf16.msra.mxu0 0
  %1931 = vmatprep.subr.bf16.mxu0 0
  %1932 = vmatpush1.bf16.msra.mxu0 0
  %1933 = vmatprep.subr.bf16.mxu0 0
  %1934 = vmatpush1.bf16.msra.mxu0 0
  %1935 = vmatprep.subr.bf16.mxu0 0
  %1936 = vmatpush1.bf16.msra.mxu0 0
  %1937 = vmatprep.subr.bf16.mxu0 0
  %1938 = vmatpush1.bf16.msra.mxu0 0
  %1939 = vmatprep.subr.bf16.mxu0 0
  %1940 = vmatpush1.bf16.msra.mxu0 0
  %1941 = vmatprep.mubr.bf16.mxu0 0
  %1942 = vmatmul.mubr.bf16.gmra.mrb[0].mxu0 %v1907
  %v1943 = vpop.f32.mrb[0].mxu0
  %v1944 = vadd.f32 0.0, %v1943
  %v1945 = vpop.f32.mrb[0].mxu0
  %v1946 = vpop.f32.mrb[0].mxu0
  %v1947 = vpop.f32.mrb[0].mxu0
  %1948 = vdwg.mxu0
  %v1949 = vpack.c.bf16 %v1944, %v1944
  %v1950 = vld [vmem:[%s14] sm:$0xf]
  %v1951 = vld [vmem:[%s14 + $0x4] sm:$0xf]
  %v1952 = vld [vmem:[%s14 + $0x8] sm:$0xf]
  %v1953 = vld [vmem:[%s14 + $0xc] sm:$0xf]
  %v1954 = vld [vmem:[%s14 + $0x10] sm:$0xf]
  %v1955 = vld [vmem:[%s14 + $0x14] sm:$0xf]
  %v1956 = vld [vmem:[%s14 + $0x18] sm:$0xf]
  %v1957 = vld [vmem:[%s14 + $0x1c] sm:$0xf]
  %v1958 = vld [vmem:[%s15] sm:$0x1]
  %v1960 = vlaneseq
  %v1961 = vshrl.u32 %v1960, 7
  %v1962 = vsub.s32 0, %v1961
  %v1963 = vrot.slane %v1958, %v1962
  %v1973 = vunpack.c.l.b16 %v1950
  %v1974 = vunpack.c.l.b16 %v1951
  %v1975 = vunpack.c.l.b16 %v1952
  %v1976 = vunpack.c.l.b16 %v1953
  %v1977 = vunpack.c.l.b16 %v1954
  %v1978 = vunpack.c.l.b16 %v1955
  %v1979 = vunpack.c.l.b16 %v1956
  %v1980 = vunpack.c.l.b16 %v1957
  %v1981 = vpack.c.b16 %v1974, %v1973
  %v1982 = vpack.c.b16 %v1976, %v1975
  %v1983 = vpack.c.b16 %v1978, %v1977
  %v1984 = vpack.c.b16 %v1980, %v1979
  %v1990 = vsel %vm531, %v1949, 0
  %1992 = vmatprep.subr.bf16.mxu0 0
  %1993 = vmatpush1.bf16.msra.mxu0 %v1981
  %1994 = vmatprep.subr.bf16.mxu0 0
  %1995 = vmatpush1.bf16.msra.mxu0 %v1982
  %1996 = vmatprep.subr.bf16.mxu0 0
  %1997 = vmatpush1.bf16.msra.mxu0 %v1983
  %1998 = vmatprep.subr.bf16.mxu0 0
  %1999 = vmatpush1.bf16.msra.mxu0 %v1984
  %2000 = vmatprep.subr.bf16.mxu0 0
  %2001 = vmatpush1.bf16.msra.mxu0 0
  %2002 = vmatprep.subr.bf16.mxu0 0
  %2003 = vmatpush1.bf16.msra.mxu0 0
  %2004 = vmatprep.subr.bf16.mxu0 0
  %2005 = vmatpush1.bf16.msra.mxu0 0
  %2006 = vmatprep.subr.bf16.mxu0 0
  %2007 = vmatpush1.bf16.msra.mxu0 0
  %2008 = vmatprep.subr.bf16.mxu0 0
  %2009 = vmatpush1.bf16.msra.mxu0 0
  %2010 = vmatprep.subr.bf16.mxu0 0
  %2011 = vmatpush1.bf16.msra.mxu0 0
  %2012 = vmatprep.subr.bf16.mxu0 0
  %2013 = vmatpush1.bf16.msra.mxu0 0
  %2014 = vmatprep.subr.bf16.mxu0 0
  %2015 = vmatpush1.bf16.msra.mxu0 0
  %2016 = vmatprep.subr.bf16.mxu0 0
  %2017 = vmatpush1.bf16.msra.mxu0 0
  %2018 = vmatprep.subr.bf16.mxu0 0
  %2019 = vmatpush1.bf16.msra.mxu0 0
  %2020 = vmatprep.subr.bf16.mxu0 0
  %2021 = vmatpush1.bf16.msra.mxu0 0
  %2022 = vmatprep.subr.bf16.mxu0 0
  %2023 = vmatpush1.bf16.msra.mxu0 0
  %2024 = vmatprep.mubr.bf16.mxu0 0
  %2025 = vmatmul.mubr.bf16.gmra.mrb[0].mxu0 %v1990
  %v2026 = vpop.f32.mrb[0].mxu0
  %v2027 = vadd.f32 %v1963, %v2026
  %v2028 = vpop.f32.mrb[0].mxu0
  %v2029 = vpop.f32.mrb[0].mxu0
  %v2030 = vpop.f32.mrb[0].mxu0
  %2031 = vdwg.mxu0
  %vm2032 = vcmask 9216
  %2033 = vst.msk [vmem:[%s16] sm:$0x3] %vm2032, %v2027
  // Predicated region
  $region66: #{pointnet_forward.1} parent=0 // pred_check
    _
  $region67: #{pointnet_forward.1} parent=0 // pred_check_branch
    %2035 = sbr.rel (0) target = $region69
  $region68: #{pointnet_forward.1} parent=0 // pred_region
    _
  $region69: #{pointnet_forward.1} parent=0 // pred_fallthru
    _
  // Predicated region
  $region70: #{pointnet_forward.1} parent=0 // pred_check
    _
  $region71: #{pointnet_forward.1} parent=0 // pred_check_branch
    %2037 = sbr.rel (0) target = $region73
  $region72: #{pointnet_forward.1} parent=0 // pred_region
    _
  $region73: #{pointnet_forward.1} parent=0 // pred_fallthru
    _

</llo_original>
